<compile_context>
chip_gen: v7x
topology: tpu7x:2x2x1
jax: 0.10.0
libtpu: 0.0.40
codegen_flags: <defaults>
</compile_context>

<pallas_src>
import functools

import jax
import jax.numpy as jnp
from jax.experimental import pallas as pl
from jax.experimental.pallas import tpu as pltpu


# ---------------------------------------------------------------------------
# Kernel
# ---------------------------------------------------------------------------
def _qkv_attn_kernel(*refs, have_bias, have_gate):
    """One grid step: `ts` independent full attentions of one (batch*head).

    q block: (1, ts, Sq, C)   k/v blocks: (1, ts, Sk, C)
    bias block: (1, 1, Sq, Sk)  [typ='start', shared over the tiled axis]
             or (1, ts, 1, Sk)  [typ='end', per-row bias]
    gate / out blocks: (1, ts, Sq, C)
    """
    o_ref = refs[-1]
    q_ref, k_ref, v_ref = refs[0], refs[1], refs[2]
    idx = 3
    bias_ref = None
    gate_ref = None
    if have_bias:
        bias_ref = refs[idx]
        idx += 1
    if have_gate:
        gate_ref = refs[idx]
        idx += 1

    q = q_ref[0]                      # (ts, Sq, C)
    k = k_ref[0]                      # (ts, Sk, C)

    # Scores on the MXU, f32 accumulation; operands keep the input dtype.
    s = jnp.einsum('tqc,tkc->tqk', q, k, preferred_element_type=jnp.float32)

    if have_bias:
        # Broadcasts against (ts, Sq, Sk) for both bias layouts.
        s = s + bias_ref[0].astype(jnp.float32)

    # Numerically stable softmax over the key axis (all f32).
    m = jnp.max(s, axis=-1, keepdims=True)
    p = jnp.exp(s - m)
    a = p / jnp.sum(p, axis=-1, keepdims=True)

    o = jnp.einsum('tqk,tkc->tqc', a.astype(v_ref.dtype), v_ref[0],
                   preferred_element_type=jnp.float32)

    if have_gate:
        o = o * gate_ref[0].astype(jnp.float32)

    o_ref[0] = o.astype(o_ref.dtype)


# ---------------------------------------------------------------------------
# Tile sizing from a VMEM budget (tightest chip: v7x, 64 MiB physical).
# ---------------------------------------------------------------------------
def _choose_tile(S1, Sq, Sk, C, itemsize, bias_per_row, have_gate,
                 budget_bytes=24 * 1024 * 1024):
    io = 2 * Sq * C + 2 * Sk * C                 # q + out, k + v  (per t-slice)
    if have_gate:
        io += Sq * C
    if bias_per_row:
        io += Sk
    per_t = 2 * io * itemsize                    # double-buffered DMA blocks
    per_t += 2 * Sq * Sk * 4 + Sq * C * 4        # f32 scores/probs + f32 out
    ts = max(1, budget_bytes // max(per_t, 1))
    return int(min(ts, S1, 512))


# ---------------------------------------------------------------------------
# Canonical ('start'-form) attention over the second spatial axis.
#   qc: (BH, S1, Sq, C), kc/vc: (BH, S1, Sk, C)
#   bias_c: (BH, 1, Sq, Sk)  or  (BH, S1, 1, Sk)  or  None
#   gate_c: (BH, S1, Sq, C)  or  None
# ---------------------------------------------------------------------------
def _attention_core(qc, kc, vc, bias_c, gate_c):
    BH, S1, Sq, C = qc.shape
    Sk = kc.shape[2]
    itemsize = jnp.dtype(qc.dtype).itemsize
    bias_per_row = bias_c is not None and bias_c.shape[1] != 1
    ts = _choose_tile(S1, Sq, Sk, C, itemsize, bias_per_row,
                      gate_c is not None)
    grid = (BH, pl.cdiv(S1, ts))     # no wrapper-side pad of S1

    in_specs = [
        pl.BlockSpec((1, ts, Sq, C), lambda b, s: (b, s, 0, 0)),   # q
        pl.BlockSpec((1, ts, Sk, C), lambda b, s: (b, s, 0, 0)),   # k
        pl.BlockSpec((1, ts, Sk, C), lambda b, s: (b, s, 0, 0)),   # v
    ]
    args = [qc, kc, vc]

    if bias_c is not None:
        if bias_c.shape[1] == 1:     # typ='start': shared across the S1 tiles
            in_specs.append(
                pl.BlockSpec((1, 1, Sq, Sk), lambda b, s: (b, 0, 0, 0)))
        else:                        # typ='end': per-row bias along S1
            in_specs.append(
                pl.BlockSpec((1, ts, 1, Sk), lambda b, s: (b, s, 0, 0)))
        args.append(bias_c)

    if gate_c is not None:
        in_specs.append(
            pl.BlockSpec((1, ts, Sq, C), lambda b, s: (b, s, 0, 0)))
        args.append(gate_c)

    kernel = functools.partial(_qkv_attn_kernel,
                               have_bias=bias_c is not None,
                               have_gate=gate_c is not None)

    out = pl.pallas_call(
        kernel,
        out_shape=jax.ShapeDtypeStruct((BH, S1, Sq, C), qc.dtype),
        grid_spec=pltpu.PrefetchScalarGridSpec(
            num_scalar_prefetch=0,
            grid=grid,
            in_specs=in_specs,
            out_specs=pl.BlockSpec((1, ts, Sq, C), lambda b, s: (b, s, 0, 0)),
        ),
        compiler_params=pltpu.CompilerParams(
            dimension_semantics=("parallel", "parallel"),
            vmem_limit_bytes=48 * 1024 * 1024,
        ),
    )(*args)
    return out


# ---------------------------------------------------------------------------
# Public wrapper matching QKVAttention.forward semantics.
# ---------------------------------------------------------------------------
def qkv_attention(q, k, v, bias=None, gate=None, *, nheads, typ='start'):
    BH, slq1, slq2, C = q.shape
    _, slk1, slk2, _ = k.shape
    h = nheads
    B = BH // h

    # Gate layout prep (same reshape/permute the torch module does).
    gate_c = None
    if gate is not None:
        gate_c = gate.reshape(B, slq1, slq2, C, h)
        gate_c = jnp.transpose(gate_c, (0, 4, 1, 2, 3)).reshape(BH, slq1, slq2, C)

    if typ == 'start':
        bias_c = None
        if bias is not None:
            # bias (B, slq2, slk2, h) -> (BH, 1, Sq=slq2, Sk=slk2)
            bias_c = jnp.transpose(bias, (0, 3, 1, 2)).reshape(BH, slq2, slk2)
            bias_c = bias_c[:, None, :, :]
        return _attention_core(q, k, v, bias_c, gate_c)

    elif typ == 'end':
        # Swap the spatial axes so attention runs over what becomes the
        # second spatial axis (canonical 'start' form).
        qc = jnp.swapaxes(q, 1, 2)   # (BH, slq2, slq1, C): S1=slq2, Sq=slq1
        kc = jnp.swapaxes(k, 1, 2)   # (BH, slk2, slk1, C): Sk=slk1
        vc = jnp.swapaxes(v, 1, 2)
        bias_c = None
        if bias is not None:
            # bias (B, slk1, slq2, h) -> (BH, S1=slq2, 1, Sk=slk1)
            bias_c = jnp.transpose(bias, (0, 3, 2, 1)).reshape(BH, slq2, slk1)
            bias_c = bias_c[:, :, None, :]
        gt = None if gate_c is None else jnp.swapaxes(gate_c, 1, 2)
        out_t = _attention_core(qc, kc, vc, bias_c, gt)
        return jnp.swapaxes(out_t, 1, 2)

    else:
        raise ValueError(f"unknown typ: {typ}")


# ---------------------------------------------------------------------------
# Pure-JAX reference mirroring the PyTorch module exactly.
# ---------------------------------------------------------------------------
def qkv_attention_ref(q, k, v, bias=None, gate=None, *, nheads, typ='start'):
    bsh, slq1, slq2, c = q.shape
    if typ == 'start':
        qk = jnp.einsum('abcd,abed->abce', q, k)
    else:
        qk = jnp.einsum('abcd,aecd->abce', q, k)
    qk5 = qk.reshape(-1, nheads, *qk.shape[1:])
    if bias is not None:
        if typ == 'start':
            ad = jnp.transpose(bias[:, None], (0, 4, 1, 2, 3))
        else:
            ad = jnp.transpose(bias[..., None, :], (0, 4, 3, 2, 1))
        qk5 = qk5 + ad
    a = jax.nn.softmax(qk5, axis=-1)
    a = a.reshape(-1, *qk.shape[1:])
    if typ == 'start':
        o = jnp.einsum('abcd,abde->abce', a, v)
    else:
        o = jnp.einsum('abcd,adce->abce', a, v)
    if gate is not None:
        g = gate.reshape(-1, slq1, slq2, c, nheads)
        g = jnp.transpose(g, (0, 4, 1, 2, 3)).reshape(-1, slq1, slq2, c)
        o = o * g
    return o


if __name__ == "__main__":
    B, h, C, S = 2, 4, 32, 8
    BH = B * h

    key = jax.random.PRNGKey(0)
    ks = jax.random.split(key, 6)
    q = jax.random.normal(ks[0], (BH, S, S, C), jnp.float32)
    k = jax.random.normal(ks[1], (BH, S, S, C), jnp.float32)
    v = jax.random.normal(ks[2], (BH, S, S, C), jnp.float32)
    bias_s = jax.random.normal(ks[3], (B, S, S, h), jnp.float32)  # 'start' bias
    bias_e = jax.random.normal(ks[4], (B, S, S, h), jnp.float32)  # 'end' bias
    gate = jax.random.uniform(ks[5], (B, S, S, C * h), jnp.float32)

    cases = [
        ("start", None, None),
        ("start", bias_s, gate),
        ("end", bias_e, gate),
    ]
    for typ, b_, g_ in cases:
        out = qkv_attention(q, k, v, b_, g_, nheads=h, typ=typ)
        out = jax.block_until_ready(out)
        ref = qkv_attention_ref(q, k, v, b_, g_, nheads=h, typ=typ)
        assert out.shape == ref.shape, f"{typ}: shape {out.shape} vs {ref.shape}"
        err = jnp.max(jnp.abs(out - ref))
        assert jnp.allclose(out, ref, atol=2e-4, rtol=2e-4), \
            f"{typ}: max abs err {err}"

    print("KERNEL_OK")
</pallas_src>

<mosaic_0001>
module attributes {stable_mosaic.version = 11 : i64} {
  func.func @_qkv_attn_kernel(%arg0: i32, %arg1: i32, %arg2: memref<1x8x8x32xf32, #tpu.memory_space<vmem>>, %arg3: memref<1x8x8x32xf32, #tpu.memory_space<vmem>>, %arg4: memref<1x8x8x32xf32, #tpu.memory_space<vmem>>, %arg5: memref<1x8x8x32xf32, #tpu.memory_space<vmem>>) attributes {dimension_semantics = [#tpu.dimension_semantics<parallel>, #tpu.dimension_semantics<parallel>], iteration_bounds = array<i64: 8, 1>, scalar_prefetch = 0 : i64, scratch_operands = 0 : i64, tpu.core_type = #tpu.core_type<tc>, window_params = [{transform_indices = @transform_0, window_bounds = array<i64: 1, 8, 8, 32>}, {transform_indices = @transform_1, window_bounds = array<i64: 1, 8, 8, 32>}, {transform_indices = @transform_2, window_bounds = array<i64: 1, 8, 8, 32>}, {transform_indices = @transform_3, window_bounds = array<i64: 1, 8, 8, 32>}]} {
    %c0 = arith.constant 0 : index
    %c0_0 = arith.constant 0 : index
    %c0_1 = arith.constant 0 : index
    %c0_2 = arith.constant 0 : index
    %0 = vector.load %arg2[%c0, %c0_0, %c0_1, %c0_2] : memref<1x8x8x32xf32, #tpu.memory_space<vmem>>, vector<1x8x8x32xf32>
    %1 = vector.shape_cast %0 : vector<1x8x8x32xf32> to vector<8x8x32xf32>
    %c0_3 = arith.constant 0 : index
    %c0_4 = arith.constant 0 : index
    %c0_5 = arith.constant 0 : index
    %c0_6 = arith.constant 0 : index
    %2 = vector.load %arg3[%c0_3, %c0_4, %c0_5, %c0_6] : memref<1x8x8x32xf32, #tpu.memory_space<vmem>>, vector<1x8x8x32xf32>
    %3 = vector.shape_cast %2 : vector<1x8x8x32xf32> to vector<8x8x32xf32>
    "tpu.trace_start"() <{level = 10 : i32, message = "tqc,tkc->tqk"}> : () -> ()
    %cst = arith.constant dense<0.000000e+00> : vector<8x8x8xf32>
    %4 = tpu.matmul %1, %3, %cst {dimension_numbers = #tpu.dot_dimension_numbers<[2], [2], [1], [1], [0, 0, 0, 1, 1, 1], [0], [0]>} : vector<8x8x32xf32>, vector<8x8x32xf32>, vector<8x8x8xf32> -> vector<8x8x8xf32>
    "tpu.trace_stop"() : () -> ()
    %cst_7 = arith.constant dense<0xFF800000> : vector<8x8xf32>
    %5 = vector.multi_reduction <maximumf>, %4, %cst_7 [2] : vector<8x8x8xf32> to vector<8x8xf32>
    %6 = vector.shape_cast %5 : vector<8x8xf32> to vector<8x8x1xf32>
    %7 = vector.broadcast %6 : vector<8x8x1xf32> to vector<8x8x8xf32>
    %8 = arith.subf %4, %7 : vector<8x8x8xf32>
    %9 = math.exp %8 : vector<8x8x8xf32>
    %cst_8 = arith.constant dense<0.000000e+00> : vector<8x8xf32>
    %10 = vector.multi_reduction <add>, %9, %cst_8 [2] : vector<8x8x8xf32> to vector<8x8xf32>
    %11 = vector.shape_cast %10 : vector<8x8xf32> to vector<8x8x1xf32>
    %12 = vector.broadcast %11 : vector<8x8x1xf32> to vector<8x8x8xf32>
    %13 = arith.divf %9, %12 : vector<8x8x8xf32>
    %c0_9 = arith.constant 0 : index
    %c0_10 = arith.constant 0 : index
    %c0_11 = arith.constant 0 : index
    %c0_12 = arith.constant 0 : index
    %14 = vector.load %arg4[%c0_9, %c0_10, %c0_11, %c0_12] : memref<1x8x8x32xf32, #tpu.memory_space<vmem>>, vector<1x8x8x32xf32>
    %15 = vector.shape_cast %14 : vector<1x8x8x32xf32> to vector<8x8x32xf32>
    "tpu.trace_start"() <{level = 10 : i32, message = "tqk,tkc->tqc"}> : () -> ()
    %cst_13 = arith.constant dense<0.000000e+00> : vector<8x8x32xf32>
    %16 = tpu.matmul %13, %15, %cst_13 {dimension_numbers = #tpu.dot_dimension_numbers<[2], [1], [1], [2], [0, 0, 0, 1, 1, 2], [0], [0]>} : vector<8x8x8xf32>, vector<8x8x32xf32>, vector<8x8x32xf32> -> vector<8x8x32xf32>
    "tpu.trace_stop"() : () -> ()
    %c0_14 = arith.constant 0 : index
    %c0_15 = arith.constant 0 : index
    %c0_16 = arith.constant 0 : index
    %c0_17 = arith.constant 0 : index
    %17 = vector.load %arg5[%c0_14, %c0_15, %c0_16, %c0_17] : memref<1x8x8x32xf32, #tpu.memory_space<vmem>>, vector<1x8x8x32xf32>
    %18 = vector.shape_cast %17 : vector<1x8x8x32xf32> to vector<8x8x32xf32>
    %19 = vector.shape_cast %16 : vector<8x8x32xf32> to vector<1x8x8x32xf32>
    tpu.vector_store %arg5[%c0_14, %c0_15, %c0_16, %c0_17], %19 {strides = array<i32>} : memref<1x8x8x32xf32, #tpu.memory_space<vmem>>, vector<1x8x8x32xf32>,
    return
  }
  func.func @transform_0(%arg0: i32, %arg1: i32) -> (i32, i32, i32, i32) {
    %c0_i32 = arith.constant 0 : i32
    %c0_i32_0 = arith.constant 0 : i32
    %c0_i32_1 = arith.constant 0 : i32
    return %arg0, %arg1, %c0_i32, %c0_i32_0 : i32, i32, i32, i32
  }
  func.func @transform_1(%arg0: i32, %arg1: i32) -> (i32, i32, i32, i32) {
    %c0_i32 = arith.constant 0 : i32
    %c0_i32_0 = arith.constant 0 : i32
    %c0_i32_1 = arith.constant 0 : i32
    return %arg0, %arg1, %c0_i32, %c0_i32_0 : i32, i32, i32, i32
  }
  func.func @transform_2(%arg0: i32, %arg1: i32) -> (i32, i32, i32, i32) {
    %c0_i32 = arith.constant 0 : i32
    %c0_i32_0 = arith.constant 0 : i32
    %c0_i32_1 = arith.constant 0 : i32
    return %arg0, %arg1, %c0_i32, %c0_i32_0 : i32, i32, i32, i32
  }
  func.func @transform_3(%arg0: i32, %arg1: i32) -> (i32, i32, i32, i32) {
    %c0_i32 = arith.constant 0 : i32
    %c0_i32_0 = arith.constant 0 : i32
    %c0_i32_1 = arith.constant 0 : i32
    return %arg0, %arg1, %c0_i32, %c0_i32_0 : i32, i32, i32, i32
  }
}

</mosaic_0001>

<llo_original>
// kernel: tpu_custom_call.1
$region0: #{tpu_custom_call.1}
  #allocation0 [shape = 'u32[]', space=smem, size = 0x4, offset = 0x4, fixed_abs, tag = 'smem constant byte address 0x4 - core index']
  #allocation1 [shape = 'u32[144,128]{1,0:T(1,128)}', space=vmem, size = 0x12000, scoped, tag = 'internal scratch']
  %s0 = inlined_call_operand.hbm [shape: f32[8,8,8,32], index: 0, kind: input, shape index: {}]
  %s1 = inlined_call_operand.hbm [shape: f32[8,8,8,32], index: 1, kind: input, shape index: {}]
  %s2 = inlined_call_operand.hbm [shape: f32[8,8,8,32], index: 2, kind: input, shape index: {}]
  %s3 = inlined_call_operand.hbm [shape: f32[8,8,8,32], index: 3, kind: output, shape index: {}]
  %s4 = sld [smem:[#allocation0]]
  $region57: #{tpu_custom_call.1} parent=0
    _
  %s6 = ssub.s32 1, %s4
  %s7 = scalar_select 0, %s6, %s4
  $region1: #{tpu_custom_call.1} parent=0
    #allocation2 [shape = 'u8[65536]{0}', space=vmem, size = 0x10000, scoped, tag = 'input window, operand 0']
    #allocation3 [shape = 's32[2]{0}', space=sflag, size = 0x8, scoped, tag = 'scoped memory for tpu_custom_call.1']
    #allocation4 [shape = 's32[2]{0}', space=sflag, size = 0x8, scoped, tag = 'scoped memory for tpu_custom_call.1']
    #allocation5 [shape = 'u8[65536]{0}', space=vmem, size = 0x10000, scoped, tag = 'input window, operand 1']
    #allocation6 [shape = 's32[2]{0}', space=sflag, size = 0x8, scoped, tag = 'scoped memory for tpu_custom_call.1']
    #allocation7 [shape = 'u8[65536]{0}', space=vmem, size = 0x10000, scoped, tag = 'input window, operand 2']
    #allocation8 [shape = 'u8[65536]{0}', space=vmem, size = 0x10000, scoped, tag = 'output window, operand 0']
    %8 = vsyncpa [#allocation3], 0
    %s9 = scalar_lea.sflag [#allocation3], 1
    %10 = vsyncpa %s9, 0
    %11 = vsyncpa [#allocation6], 0
    %s12 = scalar_lea.sflag [#allocation6], 1
    %13 = vsyncpa %s12, 0
    %14 = vsyncpa [#allocation4], 0
    %s15 = scalar_lea.sflag [#allocation4], 1
    %16 = vsyncpa %s15, 0
    loop: start=0, step=1, limit=10
    $region2: #{tpu_custom_call.1} parent=1 // loop_pre_header
      _
    $region3: #{tpu_custom_call.1} parent=1 // loop_header
      %s18 = sphi 0, %s22
      %p19 = scmp.ge.s32.totalorder %s18, 10
      %s25 = sphi 0, %s37
      %s26 = sphi 0, %s33
      %s27 = sphi 0, %s25
      %s28 = sphi 0, %s26
      %s29 = sphi 0, %s27
      %s30 = sphi 0, %s28
      %s42 = sphi 0, %s44
      %s45 = sphi 0, %s42
      %s46 = sphi 0, %s45
      %s62 = sphi 0, %s46
      %s70 = sphi 0, %s72
      %s73 = sphi 0, %s70
      %s74 = sphi 0, %s73
      %s90 = sphi 0, %s74
      %s98 = sphi 0, %s100
      %s101 = sphi 0, %s98
      %s102 = sphi 0, %s101
      %s118 = sphi 0, %s102
      %s126 = sphi 0, %s128
      %s129 = sphi 0, %s126
      %s130 = sphi 0, %s129
      %s146 = sphi 0, %s130
    $region4: #{tpu_custom_call.1} parent=1 // loop_header_branch
      %21 = sbr.rel (%p19) target = $region8
    $region5: #{tpu_custom_call.1} parent=1 // loop_body
      %s23 = ssub.s32 %s18, 1
      %s24 = ssub.s32 %s18, 2
      %s31 = sadd.s32 1, %s26
      %p32 = scmp.ge.s32.totalorder %s31, 1
      %s33 = scalar_select %p32, 0, %s31
      %s34 = sadd.s32 1, %s25
      %s35 = scalar_select %p32, %s34, %s25
      %p36 = scmp.ge.s32.totalorder %s35, 8
      %s37 = scalar_select %p36, 0, %s35
      %s38 = ssub.s32 %s25, %s37
      %s39 = ssub.s32 %s26, %s33
      %s40 = sor.u32 %s38, %s39
      %p41 = scmp.eq.s32.totalorder %s40, 0
      %s43 = sadd.s32 %s42, 1
      %s44 = scalar_select %p41, %s42, %s43
      %p47 = pneg %p41
      %p48 = scmp.eq.s32.totalorder %s18, 7
      %p49 = por %p47, %p48
      %p50 = scmp.ne.s32.totalorder %s42, %s45
      %p51 = scmp.eq.s32.totalorder %s18, 0
      %p52 = por %p50, %p51
      %p53 = scmp.ne.s32.totalorder %s42, %s45
      %p54 = scmp.eq.s32.totalorder %s23, 7
      %p55 = por %p53, %p54
      %p56 = scmp.ne.s32.totalorder %s45, %s46
      %p57 = scmp.eq.s32.totalorder %s23, 0
      %p58 = por %p56, %p57
      %p59 = scmp.ne.s32.totalorder %s45, %s46
      %p60 = scmp.eq.s32.totalorder %s24, 7
      %p61 = por %p59, %p60
      %p63 = scmp.ne.s32.totalorder %s46, %s62
      %p64 = scmp.eq.s32.totalorder %s24, 0
      %p65 = por %p63, %p64
      %s66 = ssub.s32 %s25, %s37
      %s67 = ssub.s32 %s26, %s33
      %s68 = sor.u32 %s66, %s67
      %p69 = scmp.eq.s32.totalorder %s68, 0
      %s71 = sadd.s32 %s70, 1
      %s72 = scalar_select %p69, %s70, %s71
      %p75 = pneg %p69
      %p76 = scmp.eq.s32.totalorder %s18, 7
      %p77 = por %p75, %p76
      %p78 = scmp.ne.s32.totalorder %s70, %s73
      %p79 = scmp.eq.s32.totalorder %s18, 0
      %p80 = por %p78, %p79
      %p81 = scmp.ne.s32.totalorder %s70, %s73
      %p82 = scmp.eq.s32.totalorder %s23, 7
      %p83 = por %p81, %p82
      %p84 = scmp.ne.s32.totalorder %s73, %s74
      %p85 = scmp.eq.s32.totalorder %s23, 0
      %p86 = por %p84, %p85
      %p87 = scmp.ne.s32.totalorder %s73, %s74
      %p88 = scmp.eq.s32.totalorder %s24, 7
      %p89 = por %p87, %p88
      %p91 = scmp.ne.s32.totalorder %s74, %s90
      %p92 = scmp.eq.s32.totalorder %s24, 0
      %p93 = por %p91, %p92
      %s94 = ssub.s32 %s25, %s37
      %s95 = ssub.s32 %s26, %s33
      %s96 = sor.u32 %s94, %s95
      %p97 = scmp.eq.s32.totalorder %s96, 0
      %s99 = sadd.s32 %s98, 1
      %s100 = scalar_select %p97, %s98, %s99
      %p103 = pneg %p97
      %p104 = scmp.eq.s32.totalorder %s18, 7
      %p105 = por %p103, %p104
      %p106 = scmp.ne.s32.totalorder %s98, %s101
      %p107 = scmp.eq.s32.totalorder %s18, 0
      %p108 = por %p106, %p107
      %p109 = scmp.ne.s32.totalorder %s98, %s101
      %p110 = scmp.eq.s32.totalorder %s23, 7
      %p111 = por %p109, %p110
      %p112 = scmp.ne.s32.totalorder %s101, %s102
      %p113 = scmp.eq.s32.totalorder %s23, 0
      %p114 = por %p112, %p113
      %p115 = scmp.ne.s32.totalorder %s101, %s102
      %p116 = scmp.eq.s32.totalorder %s24, 7
      %p117 = por %p115, %p116
      %p119 = scmp.ne.s32.totalorder %s102, %s118
      %p120 = scmp.eq.s32.totalorder %s24, 0
      %p121 = por %p119, %p120
      %s122 = ssub.s32 %s25, %s37
      %s123 = ssub.s32 %s26, %s33
      %s124 = sor.u32 %s122, %s123
      %p125 = scmp.eq.s32.totalorder %s124, 0
      %s127 = sadd.s32 %s126, 1
      %s128 = scalar_select %p125, %s126, %s127
      %p131 = pneg %p125
      %p132 = scmp.eq.s32.totalorder %s18, 7
      %p133 = por %p131, %p132
      %p134 = scmp.ne.s32.totalorder %s126, %s129
      %p135 = scmp.eq.s32.totalorder %s18, 0
      %p136 = por %p134, %p135
      %p137 = scmp.ne.s32.totalorder %s126, %s129
      %p138 = scmp.eq.s32.totalorder %s23, 7
      %p139 = por %p137, %p138
      %p140 = scmp.ne.s32.totalorder %s129, %s130
      %p141 = scmp.eq.s32.totalorder %s23, 0
      %p142 = por %p140, %p141
      %p143 = scmp.ne.s32.totalorder %s129, %s130
      %p144 = scmp.eq.s32.totalorder %s24, 7
      %p145 = por %p143, %p144
      %p147 = scmp.ne.s32.totalorder %s130, %s146
      %p148 = scmp.eq.s32.totalorder %s24, 0
      %p149 = por %p147, %p148
      %p150 = scmp.le.s32.totalorder 1, %s18
      %p151 = scmp.lt.s32.totalorder %s18, 9
      %p152 = pnand %p150, %p151
      %p153 = pneg %p152
      // Predicated region
      $region9: #{tpu_custom_call.1} parent=5 // pred_check
        _
      $region10: #{tpu_custom_call.1} parent=5 // pred_check_branch
        %155 = sbr.rel (%p152) target = $region12
      $region11: #{tpu_custom_call.1} parent=5 // pred_region
        %s156 = ssub.s32 %s18, 1
      $region12: #{tpu_custom_call.1} parent=5 // pred_fallthru
        _
      %p157 = scmp.lt.s32.totalorder %s18, 8
      // Predicated region
      $region13: #{tpu_custom_call.1} parent=5 // pred_check
        %p158 = pneg %p157
      $region14: #{tpu_custom_call.1} parent=5 // pred_check_branch
        %160 = sbr.rel (%p158) target = $region16
      $region15: #{tpu_custom_call.1} parent=5 // pred_region
        // Predicated region
        $region17: #{tpu_custom_call.1} parent=15 // pred_check
          %p161 = pneg %p52
        $region18: #{tpu_custom_call.1} parent=15 // pred_check_branch
          %163 = sbr.rel (%p161) target = $region20
        $region19: #{tpu_custom_call.1} parent=15 // pred_region
          %s164 = sand.u32 %s42, 1
          %s165 = scalar_lea.sflag [#allocation3], %s164
          %s166 = sand.u32 %s42, 1
          %s167 = smul.addr %s166, 64
          %s168 = scalar_lea.vmem [#allocation2], %s167
          %s169 = smul.u32 8, %s26
          %s171 = ssub.s32 1024, 1024
          %172 = vsyncadd %s165, %s171
          %s173 = smul.addr %s25, 8
          %s174 = sadd.s32 %s169, %s173
          %s175 = smul.addr %s174, 128
          %s176 = scalar_lea.hbm %s0, %s175
          %s177 = sshll.u32 %s168, 4
          %s178 = int_to_ptr.vmem [resolvable:$true] %s177
          %183 = dma.hbm_to_vmem [thread:$0]  %s176, 1024, %s178, %s165, 128, 128, 8
        $region20: #{tpu_custom_call.1} parent=15 // pred_fallthru
          _
        // Predicated region
        $region21: #{tpu_custom_call.1} parent=15 // pred_check
          %p184 = pneg %p80
        $region22: #{tpu_custom_call.1} parent=15 // pred_check_branch
          %186 = sbr.rel (%p184) target = $region24
        $region23: #{tpu_custom_call.1} parent=15 // pred_region
          %s187 = sand.u32 %s18, 1
          %s188 = scalar_lea.sflag [#allocation6], %s187
          %s189 = sand.u32 %s70, 1
          %s190 = smul.addr %s189, 64
          %s191 = scalar_lea.vmem [#allocation5], %s190
          %s192 = smul.u32 8, %s26
          %s194 = ssub.s32 1024, 1024
          %195 = vsyncadd %s188, %s194
          %s196 = smul.addr %s25, 8
          %s197 = sadd.s32 %s192, %s196
          %s198 = smul.addr %s197, 128
          %s199 = scalar_lea.hbm %s1, %s198
          %s200 = sshll.u32 %s191, 4
          %s201 = int_to_ptr.vmem [resolvable:$true] %s200
          %206 = dma.hbm_to_vmem [thread:$0]  %s199, 1024, %s201, %s188, 128, 128, 8
        $region24: #{tpu_custom_call.1} parent=15 // pred_fallthru
          _
        // Predicated region
        $region25: #{tpu_custom_call.1} parent=15 // pred_check
          %p207 = pneg %p108
        $region26: #{tpu_custom_call.1} parent=15 // pred_check_branch
          %209 = sbr.rel (%p207) target = $region28
        $region27: #{tpu_custom_call.1} parent=15 // pred_region
          %s210 = sand.u32 %s18, 1
          %s211 = scalar_lea.sflag [#allocation6], %s210
          %s212 = sand.u32 %s98, 1
          %s213 = smul.addr %s212, 64
          %s214 = scalar_lea.vmem [#allocation7], %s213
          %s215 = smul.u32 8, %s26
          %s217 = ssub.s32 1024, 1024
          %218 = vsyncadd %s211, %s217
          %s219 = smul.addr %s25, 8
          %s220 = sadd.s32 %s215, %s219
          %s221 = smul.addr %s220, 128
          %s222 = scalar_lea.hbm %s2, %s221
          %s223 = sshll.u32 %s214, 4
          %s224 = int_to_ptr.vmem [resolvable:$true] %s223
          %229 = dma.hbm_to_vmem [thread:$0]  %s222, 1024, %s224, %s211, 128, 128, 8
        $region28: #{tpu_custom_call.1} parent=15 // pred_fallthru
          _
      $region16: #{tpu_custom_call.1} parent=5 // pred_fallthru
        _
      %p230 = scmp.le.s32.totalorder 1, %s18
      %p231 = scmp.lt.s32.totalorder %s18, 9
      %p232 = pnand %p230, %p231
      %p233 = pneg %p232
      // Predicated region
      $region29: #{tpu_custom_call.1} parent=5 // pred_check
        _
      $region30: #{tpu_custom_call.1} parent=5 // pred_check_branch
        %235 = sbr.rel (%p232) target = $region32
      $region31: #{tpu_custom_call.1} parent=5 // pred_region
        %s236 = ssub.s32 %s18, 1
        %s237 = sand.u32 %s45, 1
        %s238 = scalar_lea.sflag [#allocation3], %s237
        %s239 = sand.u32 %s45, 1
        %s240 = smul.addr %s239, 64
        %s241 = scalar_lea.vmem [#allocation2], %s240
        // Predicated region
        $region33: #{tpu_custom_call.1} parent=31 // pred_check
          %p242 = pneg %p58
        $region34: #{tpu_custom_call.1} parent=31 // pred_check_branch
          %244 = sbr.rel (%p242) target = $region36
        $region35: #{tpu_custom_call.1} parent=31 // pred_region
          %245 = dma.done %s238, 1024
        $region36: #{tpu_custom_call.1} parent=31 // pred_fallthru
          _
        %s246 = sand.u32 %s23, 1
        %s247 = scalar_lea.sflag [#allocation6], %s246
        %s248 = sand.u32 %s73, 1
        %s249 = smul.addr %s248, 64
        %s250 = scalar_lea.vmem [#allocation5], %s249
        // Predicated region
        $region37: #{tpu_custom_call.1} parent=31 // pred_check
          %p251 = pneg %p86
        $region38: #{tpu_custom_call.1} parent=31 // pred_check_branch
          %253 = sbr.rel (%p251) target = $region40
        $region39: #{tpu_custom_call.1} parent=31 // pred_region
          %254 = dma.done %s247, 1024
        $region40: #{tpu_custom_call.1} parent=31 // pred_fallthru
          _
        %s255 = sand.u32 %s23, 1
        %s256 = scalar_lea.sflag [#allocation6], %s255
        %s257 = sand.u32 %s101, 1
        %s258 = smul.addr %s257, 64
        %s259 = scalar_lea.vmem [#allocation7], %s258
        // Predicated region
        $region41: #{tpu_custom_call.1} parent=31 // pred_check
          %p260 = pneg %p114
        $region42: #{tpu_custom_call.1} parent=31 // pred_check_branch
          %262 = sbr.rel (%p260) target = $region44
        $region43: #{tpu_custom_call.1} parent=31 // pred_region
          %263 = dma.done %s256, 1024
        $region44: #{tpu_custom_call.1} parent=31 // pred_fallthru
          _
        %s264 = sand.u32 %s45, 1
        %s265 = scalar_lea.sflag [#allocation3], %s264
        %s266 = sand.u32 %s45, 1
        %s267 = smul.addr %s266, 64
        %s268 = scalar_lea.vmem [#allocation2], %s267
        %p269 = pneg %p58
        %p270 = pneg %p55
        %s271 = sand.u32 %s23, 1
        %s272 = scalar_lea.sflag [#allocation6], %s271
        %s273 = sand.u32 %s73, 1
        %s274 = smul.addr %s273, 64
        %s275 = scalar_lea.vmem [#allocation5], %s274
        %p276 = pneg %p86
        %p277 = pneg %p83
        %s278 = sand.u32 %s23, 1
        %s279 = scalar_lea.sflag [#allocation6], %s278
        %s280 = sand.u32 %s101, 1
        %s281 = smul.addr %s280, 64
        %s282 = scalar_lea.vmem [#allocation7], %s281
        %p283 = pneg %p114
        %p284 = pneg %p111
        %p285 = pneg %p142
        %p286 = pneg %p139
        %s287 = sand.u32 %s129, 1
        %s288 = scalar_lea.sflag [#allocation4], %s287
        %s289 = sand.u32 %s129, 1
        %s290 = smul.addr %s289, 64
        %s291 = scalar_lea.vmem [#allocation8], %s290
        %s292 = smul.u32 8, %s28
        %s293 = smul.u32 8, %s28
        %s294 = smul.u32 8, %s28
        %s295 = smul.u32 8, %s28
        %v296 = vld [vmem:[%s241] sm:$0xff]
        %v297 = vld [vmem:[%s241 + $0x8] sm:$0xff]
        %v298 = vld [vmem:[%s241 + $0x10] sm:$0xff]
        %v299 = vld [vmem:[%s241 + $0x18] sm:$0xff]
        %v300 = vld [vmem:[%s241 + $0x20] sm:$0xff]
        %v301 = vld [vmem:[%s241 + $0x28] sm:$0xff]
        %v302 = vld [vmem:[%s241 + $0x30] sm:$0xff]
        %v303 = vld [vmem:[%s241 + $0x38] sm:$0xff]
        %v304 = vld [vmem:[%s250] sm:$0xff]
        %v305 = vld [vmem:[%s250 + $0x8] sm:$0xff]
        %v306 = vld [vmem:[%s250 + $0x10] sm:$0xff]
        %v307 = vld [vmem:[%s250 + $0x18] sm:$0xff]
        %v308 = vld [vmem:[%s250 + $0x20] sm:$0xff]
        %v309 = vld [vmem:[%s250 + $0x28] sm:$0xff]
        %v310 = vld [vmem:[%s250 + $0x30] sm:$0xff]
        %v311 = vld [vmem:[%s250 + $0x38] sm:$0xff]
        %vm312 = vcmask 261120
        %v314 = vsel %vm312, %v296, 0
        %v317 = vsel %vm312, %v304, 0
        %319 = vmatprep.subr.mxu0 0.0
        %320 = vmatpush1.xpose.msra.mxu0 %v317
        %321 = vmatprep.subr.mxu0 0.0
        %322 = vmatpush1.xpose.msra.mxu0 0.0
        %323 = vmatprep.subr.mxu0 0.0
        %324 = vmatpush1.xpose.msra.mxu0 0.0
        %325 = vmatprep.subr.mxu0 0.0
        %326 = vmatpush1.xpose.msra.mxu0 0.0
        %327 = vmatprep.subr.mxu0 0.0
        %328 = vmatpush1.xpose.msra.mxu0 0.0
        %329 = vmatprep.subr.mxu0 0.0
        %330 = vmatpush1.xpose.msra.mxu0 0.0
        %331 = vmatprep.subr.mxu0 0.0
        %332 = vmatpush1.xpose.msra.mxu0 0.0
        %333 = vmatprep.subr.mxu0 0.0
        %334 = vmatpush1.xpose.msra.mxu0 0.0
        %335 = vmatprep.subr.mxu0 0.0
        %336 = vmatpush1.xpose.msra.mxu0 0.0
        %337 = vmatprep.subr.mxu0 0.0
        %338 = vmatpush1.xpose.msra.mxu0 0.0
        %339 = vmatprep.subr.mxu0 0.0
        %340 = vmatpush1.xpose.msra.mxu0 0.0
        %341 = vmatprep.subr.mxu0 0.0
        %342 = vmatpush1.xpose.msra.mxu0 0.0
        %343 = vmatprep.subr.mxu0 0.0
        %344 = vmatpush1.xpose.msra.mxu0 0.0
        %345 = vmatprep.subr.mxu0 0.0
        %346 = vmatpush1.xpose.msra.mxu0 0.0
        %347 = vmatprep.subr.mxu0 0.0
        %348 = vmatpush1.xpose.msra.mxu0 0.0
        %349 = vmatprep.subr.mxu0 0.0
        %350 = vmatpush1.xpose.msra.mxu0 0.0
        %351 = vmatprep.subr.mxu0 0.0
        %352 = vmatpush1.xpose.msra.mxu0 0.0
        %353 = vmatprep.subr.mxu0 0.0
        %354 = vmatpush1.xpose.msra.mxu0 0.0
        %355 = vmatprep.subr.mxu0 0.0
        %356 = vmatpush1.xpose.msra.mxu0 0.0
        %357 = vmatprep.subr.mxu0 0.0
        %358 = vmatpush1.xpose.msra.mxu0 0.0
        %359 = vmatprep.subr.mxu0 0.0
        %360 = vmatpush1.xpose.msra.mxu0 0.0
        %361 = vmatprep.subr.mxu0 0.0
        %362 = vmatpush1.xpose.msra.mxu0 0.0
        %363 = vmatprep.subr.mxu0 0.0
        %364 = vmatpush1.xpose.msra.mxu0 0.0
        %365 = vmatprep.subr.mxu0 0.0
        %366 = vmatpush1.xpose.msra.mxu0 0.0
        %367 = vmatprep.subr.mxu0 0.0
        %368 = vmatpush1.xpose.msra.mxu0 0.0
        %369 = vmatprep.subr.mxu0 0.0
        %370 = vmatpush1.xpose.msra.mxu0 0.0
        %371 = vmatprep.subr.mxu0 0.0
        %372 = vmatpush1.xpose.msra.mxu0 0.0
        %373 = vmatprep.subr.mxu0 0.0
        %374 = vmatpush1.xpose.msra.mxu0 0.0
        %375 = vmatprep.subr.mxu0 0.0
        %376 = vmatpush1.xpose.msra.mxu0 0.0
        %377 = vmatprep.subr.mxu0 0.0
        %378 = vmatpush1.xpose.msra.mxu0 0.0
        %379 = vmatprep.subr.mxu0 0.0
        %380 = vmatpush1.xpose.msra.mxu0 0.0
        %381 = vmatprep.subr.mxu0 0.0
        %382 = vmatpush1.xpose.msra.mxu0 0.0
        %383 = vmatprep.mubr.f32.mxu0 0.0
        %384 = vmatmul.mubr.f32.gmra.mrb[0].mxu0 %v314
        %v385 = vpop.f32.mrb[0].mxu0
        %v386 = vadd.f32 0.0, %v385
        %v387 = vpop.f32.mrb[0].mxu0
        %388 = vdwg.mxu0
        %v390 = vsel %vm312, %v297, 0
        %v393 = vsel %vm312, %v305, 0
        %395 = vmatprep.subr.mxu0 0.0
        %396 = vmatpush1.xpose.msra.mxu0 %v393
        %397 = vmatprep.subr.mxu0 0.0
        %398 = vmatpush1.xpose.msra.mxu0 0.0
        %399 = vmatprep.subr.mxu0 0.0
        %400 = vmatpush1.xpose.msra.mxu0 0.0
        %401 = vmatprep.subr.mxu0 0.0
        %402 = vmatpush1.xpose.msra.mxu0 0.0
        %403 = vmatprep.subr.mxu0 0.0
        %404 = vmatpush1.xpose.msra.mxu0 0.0
        %405 = vmatprep.subr.mxu0 0.0
        %406 = vmatpush1.xpose.msra.mxu0 0.0
        %407 = vmatprep.subr.mxu0 0.0
        %408 = vmatpush1.xpose.msra.mxu0 0.0
        %409 = vmatprep.subr.mxu0 0.0
        %410 = vmatpush1.xpose.msra.mxu0 0.0
        %411 = vmatprep.subr.mxu0 0.0
        %412 = vmatpush1.xpose.msra.mxu0 0.0
        %413 = vmatprep.subr.mxu0 0.0
        %414 = vmatpush1.xpose.msra.mxu0 0.0
        %415 = vmatprep.subr.mxu0 0.0
        %416 = vmatpush1.xpose.msra.mxu0 0.0
        %417 = vmatprep.subr.mxu0 0.0
        %418 = vmatpush1.xpose.msra.mxu0 0.0
        %419 = vmatprep.subr.mxu0 0.0
        %420 = vmatpush1.xpose.msra.mxu0 0.0
        %421 = vmatprep.subr.mxu0 0.0
        %422 = vmatpush1.xpose.msra.mxu0 0.0
        %423 = vmatprep.subr.mxu0 0.0
        %424 = vmatpush1.xpose.msra.mxu0 0.0
        %425 = vmatprep.subr.mxu0 0.0
        %426 = vmatpush1.xpose.msra.mxu0 0.0
        %427 = vmatprep.subr.mxu0 0.0
        %428 = vmatpush1.xpose.msra.mxu0 0.0
        %429 = vmatprep.subr.mxu0 0.0
        %430 = vmatpush1.xpose.msra.mxu0 0.0
        %431 = vmatprep.subr.mxu0 0.0
        %432 = vmatpush1.xpose.msra.mxu0 0.0
        %433 = vmatprep.subr.mxu0 0.0
        %434 = vmatpush1.xpose.msra.mxu0 0.0
        %435 = vmatprep.subr.mxu0 0.0
        %436 = vmatpush1.xpose.msra.mxu0 0.0
        %437 = vmatprep.subr.mxu0 0.0
        %438 = vmatpush1.xpose.msra.mxu0 0.0
        %439 = vmatprep.subr.mxu0 0.0
        %440 = vmatpush1.xpose.msra.mxu0 0.0
        %441 = vmatprep.subr.mxu0 0.0
        %442 = vmatpush1.xpose.msra.mxu0 0.0
        %443 = vmatprep.subr.mxu0 0.0
        %444 = vmatpush1.xpose.msra.mxu0 0.0
        %445 = vmatprep.subr.mxu0 0.0
        %446 = vmatpush1.xpose.msra.mxu0 0.0
        %447 = vmatprep.subr.mxu0 0.0
        %448 = vmatpush1.xpose.msra.mxu0 0.0
        %449 = vmatprep.subr.mxu0 0.0
        %450 = vmatpush1.xpose.msra.mxu0 0.0
        %451 = vmatprep.subr.mxu0 0.0
        %452 = vmatpush1.xpose.msra.mxu0 0.0
        %453 = vmatprep.subr.mxu0 0.0
        %454 = vmatpush1.xpose.msra.mxu0 0.0
        %455 = vmatprep.subr.mxu0 0.0
        %456 = vmatpush1.xpose.msra.mxu0 0.0
        %457 = vmatprep.subr.mxu0 0.0
        %458 = vmatpush1.xpose.msra.mxu0 0.0
        %459 = vmatprep.mubr.f32.mxu0 0.0
        %460 = vmatmul.mubr.f32.gmra.mrb[0].mxu0 %v390
        %v461 = vpop.f32.mrb[0].mxu0
        %v462 = vadd.f32 0.0, %v461
        %v463 = vpop.f32.mrb[0].mxu0
        %464 = vdwg.mxu0
        %v466 = vsel %vm312, %v298, 0
        %v469 = vsel %vm312, %v306, 0
        %471 = vmatprep.subr.mxu0 0.0
        %472 = vmatpush1.xpose.msra.mxu0 %v469
        %473 = vmatprep.subr.mxu0 0.0
        %474 = vmatpush1.xpose.msra.mxu0 0.0
        %475 = vmatprep.subr.mxu0 0.0
        %476 = vmatpush1.xpose.msra.mxu0 0.0
        %477 = vmatprep.subr.mxu0 0.0
        %478 = vmatpush1.xpose.msra.mxu0 0.0
        %479 = vmatprep.subr.mxu0 0.0
        %480 = vmatpush1.xpose.msra.mxu0 0.0
        %481 = vmatprep.subr.mxu0 0.0
        %482 = vmatpush1.xpose.msra.mxu0 0.0
        %483 = vmatprep.subr.mxu0 0.0
        %484 = vmatpush1.xpose.msra.mxu0 0.0
        %485 = vmatprep.subr.mxu0 0.0
        %486 = vmatpush1.xpose.msra.mxu0 0.0
        %487 = vmatprep.subr.mxu0 0.0
        %488 = vmatpush1.xpose.msra.mxu0 0.0
        %489 = vmatprep.subr.mxu0 0.0
        %490 = vmatpush1.xpose.msra.mxu0 0.0
        %491 = vmatprep.subr.mxu0 0.0
        %492 = vmatpush1.xpose.msra.mxu0 0.0
        %493 = vmatprep.subr.mxu0 0.0
        %494 = vmatpush1.xpose.msra.mxu0 0.0
        %495 = vmatprep.subr.mxu0 0.0
        %496 = vmatpush1.xpose.msra.mxu0 0.0
        %497 = vmatprep.subr.mxu0 0.0
        %498 = vmatpush1.xpose.msra.mxu0 0.0
        %499 = vmatprep.subr.mxu0 0.0
        %500 = vmatpush1.xpose.msra.mxu0 0.0
        %501 = vmatprep.subr.mxu0 0.0
        %502 = vmatpush1.xpose.msra.mxu0 0.0
        %503 = vmatprep.subr.mxu0 0.0
        %504 = vmatpush1.xpose.msra.mxu0 0.0
        %505 = vmatprep.subr.mxu0 0.0
        %506 = vmatpush1.xpose.msra.mxu0 0.0
        %507 = vmatprep.subr.mxu0 0.0
        %508 = vmatpush1.xpose.msra.mxu0 0.0
        %509 = vmatprep.subr.mxu0 0.0
        %510 = vmatpush1.xpose.msra.mxu0 0.0
        %511 = vmatprep.subr.mxu0 0.0
        %512 = vmatpush1.xpose.msra.mxu0 0.0
        %513 = vmatprep.subr.mxu0 0.0
        %514 = vmatpush1.xpose.msra.mxu0 0.0
        %515 = vmatprep.subr.mxu0 0.0
        %516 = vmatpush1.xpose.msra.mxu0 0.0
        %517 = vmatprep.subr.mxu0 0.0
        %518 = vmatpush1.xpose.msra.mxu0 0.0
        %519 = vmatprep.subr.mxu0 0.0
        %520 = vmatpush1.xpose.msra.mxu0 0.0
        %521 = vmatprep.subr.mxu0 0.0
        %522 = vmatpush1.xpose.msra.mxu0 0.0
        %523 = vmatprep.subr.mxu0 0.0
        %524 = vmatpush1.xpose.msra.mxu0 0.0
        %525 = vmatprep.subr.mxu0 0.0
        %526 = vmatpush1.xpose.msra.mxu0 0.0
        %527 = vmatprep.subr.mxu0 0.0
        %528 = vmatpush1.xpose.msra.mxu0 0.0
        %529 = vmatprep.subr.mxu0 0.0
        %530 = vmatpush1.xpose.msra.mxu0 0.0
        %531 = vmatprep.subr.mxu0 0.0
        %532 = vmatpush1.xpose.msra.mxu0 0.0
        %533 = vmatprep.subr.mxu0 0.0
        %534 = vmatpush1.xpose.msra.mxu0 0.0
        %535 = vmatprep.mubr.f32.mxu0 0.0
        %536 = vmatmul.mubr.f32.gmra.mrb[0].mxu0 %v466
        %v537 = vpop.f32.mrb[0].mxu0
        %v538 = vadd.f32 0.0, %v537
        %v539 = vpop.f32.mrb[0].mxu0
        %540 = vdwg.mxu0
        %v542 = vsel %vm312, %v299, 0
        %v545 = vsel %vm312, %v307, 0
        %547 = vmatprep.subr.mxu0 0.0
        %548 = vmatpush1.xpose.msra.mxu0 %v545
        %549 = vmatprep.subr.mxu0 0.0
        %550 = vmatpush1.xpose.msra.mxu0 0.0
        %551 = vmatprep.subr.mxu0 0.0
        %552 = vmatpush1.xpose.msra.mxu0 0.0
        %553 = vmatprep.subr.mxu0 0.0
        %554 = vmatpush1.xpose.msra.mxu0 0.0
        %555 = vmatprep.subr.mxu0 0.0
        %556 = vmatpush1.xpose.msra.mxu0 0.0
        %557 = vmatprep.subr.mxu0 0.0
        %558 = vmatpush1.xpose.msra.mxu0 0.0
        %559 = vmatprep.subr.mxu0 0.0
        %560 = vmatpush1.xpose.msra.mxu0 0.0
        %561 = vmatprep.subr.mxu0 0.0
        %562 = vmatpush1.xpose.msra.mxu0 0.0
        %563 = vmatprep.subr.mxu0 0.0
        %564 = vmatpush1.xpose.msra.mxu0 0.0
        %565 = vmatprep.subr.mxu0 0.0
        %566 = vmatpush1.xpose.msra.mxu0 0.0
        %567 = vmatprep.subr.mxu0 0.0
        %568 = vmatpush1.xpose.msra.mxu0 0.0
        %569 = vmatprep.subr.mxu0 0.0
        %570 = vmatpush1.xpose.msra.mxu0 0.0
        %571 = vmatprep.subr.mxu0 0.0
        %572 = vmatpush1.xpose.msra.mxu0 0.0
        %573 = vmatprep.subr.mxu0 0.0
        %574 = vmatpush1.xpose.msra.mxu0 0.0
        %575 = vmatprep.subr.mxu0 0.0
        %576 = vmatpush1.xpose.msra.mxu0 0.0
        %577 = vmatprep.subr.mxu0 0.0
        %578 = vmatpush1.xpose.msra.mxu0 0.0
        %579 = vmatprep.subr.mxu0 0.0
        %580 = vmatpush1.xpose.msra.mxu0 0.0
        %581 = vmatprep.subr.mxu0 0.0
        %582 = vmatpush1.xpose.msra.mxu0 0.0
        %583 = vmatprep.subr.mxu0 0.0
        %584 = vmatpush1.xpose.msra.mxu0 0.0
        %585 = vmatprep.subr.mxu0 0.0
        %586 = vmatpush1.xpose.msra.mxu0 0.0
        %587 = vmatprep.subr.mxu0 0.0
        %588 = vmatpush1.xpose.msra.mxu0 0.0
        %589 = vmatprep.subr.mxu0 0.0
        %590 = vmatpush1.xpose.msra.mxu0 0.0
        %591 = vmatprep.subr.mxu0 0.0
        %592 = vmatpush1.xpose.msra.mxu0 0.0
        %593 = vmatprep.subr.mxu0 0.0
        %594 = vmatpush1.xpose.msra.mxu0 0.0
        %595 = vmatprep.subr.mxu0 0.0
        %596 = vmatpush1.xpose.msra.mxu0 0.0
        %597 = vmatprep.subr.mxu0 0.0
        %598 = vmatpush1.xpose.msra.mxu0 0.0
        %599 = vmatprep.subr.mxu0 0.0
        %600 = vmatpush1.xpose.msra.mxu0 0.0
        %601 = vmatprep.subr.mxu0 0.0
        %602 = vmatpush1.xpose.msra.mxu0 0.0
        %603 = vmatprep.subr.mxu0 0.0
        %604 = vmatpush1.xpose.msra.mxu0 0.0
        %605 = vmatprep.subr.mxu0 0.0
        %606 = vmatpush1.xpose.msra.mxu0 0.0
        %607 = vmatprep.subr.mxu0 0.0
        %608 = vmatpush1.xpose.msra.mxu0 0.0
        %609 = vmatprep.subr.mxu0 0.0
        %610 = vmatpush1.xpose.msra.mxu0 0.0
        %611 = vmatprep.mubr.f32.mxu0 0.0
        %612 = vmatmul.mubr.f32.gmra.mrb[0].mxu0 %v542
        %v613 = vpop.f32.mrb[0].mxu0
        %v614 = vadd.f32 0.0, %v613
        %v615 = vpop.f32.mrb[0].mxu0
        %616 = vdwg.mxu0
        %v618 = vsel %vm312, %v300, 0
        %v621 = vsel %vm312, %v308, 0
        %623 = vmatprep.subr.mxu0 0.0
        %624 = vmatpush1.xpose.msra.mxu0 %v621
        %625 = vmatprep.subr.mxu0 0.0
        %626 = vmatpush1.xpose.msra.mxu0 0.0
        %627 = vmatprep.subr.mxu0 0.0
        %628 = vmatpush1.xpose.msra.mxu0 0.0
        %629 = vmatprep.subr.mxu0 0.0
        %630 = vmatpush1.xpose.msra.mxu0 0.0
        %631 = vmatprep.subr.mxu0 0.0
        %632 = vmatpush1.xpose.msra.mxu0 0.0
        %633 = vmatprep.subr.mxu0 0.0
        %634 = vmatpush1.xpose.msra.mxu0 0.0
        %635 = vmatprep.subr.mxu0 0.0
        %636 = vmatpush1.xpose.msra.mxu0 0.0
        %637 = vmatprep.subr.mxu0 0.0
        %638 = vmatpush1.xpose.msra.mxu0 0.0
        %639 = vmatprep.subr.mxu0 0.0
        %640 = vmatpush1.xpose.msra.mxu0 0.0
        %641 = vmatprep.subr.mxu0 0.0
        %642 = vmatpush1.xpose.msra.mxu0 0.0
        %643 = vmatprep.subr.mxu0 0.0
        %644 = vmatpush1.xpose.msra.mxu0 0.0
        %645 = vmatprep.subr.mxu0 0.0
        %646 = vmatpush1.xpose.msra.mxu0 0.0
        %647 = vmatprep.subr.mxu0 0.0
        %648 = vmatpush1.xpose.msra.mxu0 0.0
        %649 = vmatprep.subr.mxu0 0.0
        %650 = vmatpush1.xpose.msra.mxu0 0.0
        %651 = vmatprep.subr.mxu0 0.0
        %652 = vmatpush1.xpose.msra.mxu0 0.0
        %653 = vmatprep.subr.mxu0 0.0
        %654 = vmatpush1.xpose.msra.mxu0 0.0
        %655 = vmatprep.subr.mxu0 0.0
        %656 = vmatpush1.xpose.msra.mxu0 0.0
        %657 = vmatprep.subr.mxu0 0.0
        %658 = vmatpush1.xpose.msra.mxu0 0.0
        %659 = vmatprep.subr.mxu0 0.0
        %660 = vmatpush1.xpose.msra.mxu0 0.0
        %661 = vmatprep.subr.mxu0 0.0
        %662 = vmatpush1.xpose.msra.mxu0 0.0
        %663 = vmatprep.subr.mxu0 0.0
        %664 = vmatpush1.xpose.msra.mxu0 0.0
        %665 = vmatprep.subr.mxu0 0.0
        %666 = vmatpush1.xpose.msra.mxu0 0.0
        %667 = vmatprep.subr.mxu0 0.0
        %668 = vmatpush1.xpose.msra.mxu0 0.0
        %669 = vmatprep.subr.mxu0 0.0
        %670 = vmatpush1.xpose.msra.mxu0 0.0
        %671 = vmatprep.subr.mxu0 0.0
        %672 = vmatpush1.xpose.msra.mxu0 0.0
        %673 = vmatprep.subr.mxu0 0.0
        %674 = vmatpush1.xpose.msra.mxu0 0.0
        %675 = vmatprep.subr.mxu0 0.0
        %676 = vmatpush1.xpose.msra.mxu0 0.0
        %677 = vmatprep.subr.mxu0 0.0
        %678 = vmatpush1.xpose.msra.mxu0 0.0
        %679 = vmatprep.subr.mxu0 0.0
        %680 = vmatpush1.xpose.msra.mxu0 0.0
        %681 = vmatprep.subr.mxu0 0.0
        %682 = vmatpush1.xpose.msra.mxu0 0.0
        %683 = vmatprep.subr.mxu0 0.0
        %684 = vmatpush1.xpose.msra.mxu0 0.0
        %685 = vmatprep.subr.mxu0 0.0
        %686 = vmatpush1.xpose.msra.mxu0 0.0
        %687 = vmatprep.mubr.f32.mxu0 0.0
        %688 = vmatmul.mubr.f32.gmra.mrb[0].mxu0 %v618
        %v689 = vpop.f32.mrb[0].mxu0
        %v690 = vadd.f32 0.0, %v689
        %v691 = vpop.f32.mrb[0].mxu0
        %692 = vdwg.mxu0
        %v694 = vsel %vm312, %v301, 0
        %v697 = vsel %vm312, %v309, 0
        %699 = vmatprep.subr.mxu0 0.0
        %700 = vmatpush1.xpose.msra.mxu0 %v697
        %701 = vmatprep.subr.mxu0 0.0
        %702 = vmatpush1.xpose.msra.mxu0 0.0
        %703 = vmatprep.subr.mxu0 0.0
        %704 = vmatpush1.xpose.msra.mxu0 0.0
        %705 = vmatprep.subr.mxu0 0.0
        %706 = vmatpush1.xpose.msra.mxu0 0.0
        %707 = vmatprep.subr.mxu0 0.0
        %708 = vmatpush1.xpose.msra.mxu0 0.0
        %709 = vmatprep.subr.mxu0 0.0
        %710 = vmatpush1.xpose.msra.mxu0 0.0
        %711 = vmatprep.subr.mxu0 0.0
        %712 = vmatpush1.xpose.msra.mxu0 0.0
        %713 = vmatprep.subr.mxu0 0.0
        %714 = vmatpush1.xpose.msra.mxu0 0.0
        %715 = vmatprep.subr.mxu0 0.0
        %716 = vmatpush1.xpose.msra.mxu0 0.0
        %717 = vmatprep.subr.mxu0 0.0
        %718 = vmatpush1.xpose.msra.mxu0 0.0
        %719 = vmatprep.subr.mxu0 0.0
        %720 = vmatpush1.xpose.msra.mxu0 0.0
        %721 = vmatprep.subr.mxu0 0.0
        %722 = vmatpush1.xpose.msra.mxu0 0.0
        %723 = vmatprep.subr.mxu0 0.0
        %724 = vmatpush1.xpose.msra.mxu0 0.0
        %725 = vmatprep.subr.mxu0 0.0
        %726 = vmatpush1.xpose.msra.mxu0 0.0
        %727 = vmatprep.subr.mxu0 0.0
        %728 = vmatpush1.xpose.msra.mxu0 0.0
        %729 = vmatprep.subr.mxu0 0.0
        %730 = vmatpush1.xpose.msra.mxu0 0.0
        %731 = vmatprep.subr.mxu0 0.0
        %732 = vmatpush1.xpose.msra.mxu0 0.0
        %733 = vmatprep.subr.mxu0 0.0
        %734 = vmatpush1.xpose.msra.mxu0 0.0
        %735 = vmatprep.subr.mxu0 0.0
        %736 = vmatpush1.xpose.msra.mxu0 0.0
        %737 = vmatprep.subr.mxu0 0.0
        %738 = vmatpush1.xpose.msra.mxu0 0.0
        %739 = vmatprep.subr.mxu0 0.0
        %740 = vmatpush1.xpose.msra.mxu0 0.0
        %741 = vmatprep.subr.mxu0 0.0
        %742 = vmatpush1.xpose.msra.mxu0 0.0
        %743 = vmatprep.subr.mxu0 0.0
        %744 = vmatpush1.xpose.msra.mxu0 0.0
        %745 = vmatprep.subr.mxu0 0.0
        %746 = vmatpush1.xpose.msra.mxu0 0.0
        %747 = vmatprep.subr.mxu0 0.0
        %748 = vmatpush1.xpose.msra.mxu0 0.0
        %749 = vmatprep.subr.mxu0 0.0
        %750 = vmatpush1.xpose.msra.mxu0 0.0
        %751 = vmatprep.subr.mxu0 0.0
        %752 = vmatpush1.xpose.msra.mxu0 0.0
        %753 = vmatprep.subr.mxu0 0.0
        %754 = vmatpush1.xpose.msra.mxu0 0.0
        %755 = vmatprep.subr.mxu0 0.0
        %756 = vmatpush1.xpose.msra.mxu0 0.0
        %757 = vmatprep.subr.mxu0 0.0
        %758 = vmatpush1.xpose.msra.mxu0 0.0
        %759 = vmatprep.subr.mxu0 0.0
        %760 = vmatpush1.xpose.msra.mxu0 0.0
        %761 = vmatprep.subr.mxu0 0.0
        %762 = vmatpush1.xpose.msra.mxu0 0.0
        %763 = vmatprep.mubr.f32.mxu0 0.0
        %764 = vmatmul.mubr.f32.gmra.mrb[0].mxu0 %v694
        %v765 = vpop.f32.mrb[0].mxu0
        %v766 = vadd.f32 0.0, %v765
        %v767 = vpop.f32.mrb[0].mxu0
        %768 = vdwg.mxu0
        %v770 = vsel %vm312, %v302, 0
        %v773 = vsel %vm312, %v310, 0
        %775 = vmatprep.subr.mxu0 0.0
        %776 = vmatpush1.xpose.msra.mxu0 %v773
        %777 = vmatprep.subr.mxu0 0.0
        %778 = vmatpush1.xpose.msra.mxu0 0.0
        %779 = vmatprep.subr.mxu0 0.0
        %780 = vmatpush1.xpose.msra.mxu0 0.0
        %781 = vmatprep.subr.mxu0 0.0
        %782 = vmatpush1.xpose.msra.mxu0 0.0
        %783 = vmatprep.subr.mxu0 0.0
        %784 = vmatpush1.xpose.msra.mxu0 0.0
        %785 = vmatprep.subr.mxu0 0.0
        %786 = vmatpush1.xpose.msra.mxu0 0.0
        %787 = vmatprep.subr.mxu0 0.0
        %788 = vmatpush1.xpose.msra.mxu0 0.0
        %789 = vmatprep.subr.mxu0 0.0
        %790 = vmatpush1.xpose.msra.mxu0 0.0
        %791 = vmatprep.subr.mxu0 0.0
        %792 = vmatpush1.xpose.msra.mxu0 0.0
        %793 = vmatprep.subr.mxu0 0.0
        %794 = vmatpush1.xpose.msra.mxu0 0.0
        %795 = vmatprep.subr.mxu0 0.0
        %796 = vmatpush1.xpose.msra.mxu0 0.0
        %797 = vmatprep.subr.mxu0 0.0
        %798 = vmatpush1.xpose.msra.mxu0 0.0
        %799 = vmatprep.subr.mxu0 0.0
        %800 = vmatpush1.xpose.msra.mxu0 0.0
        %801 = vmatprep.subr.mxu0 0.0
        %802 = vmatpush1.xpose.msra.mxu0 0.0
        %803 = vmatprep.subr.mxu0 0.0
        %804 = vmatpush1.xpose.msra.mxu0 0.0
        %805 = vmatprep.subr.mxu0 0.0
        %806 = vmatpush1.xpose.msra.mxu0 0.0
        %807 = vmatprep.subr.mxu0 0.0
        %808 = vmatpush1.xpose.msra.mxu0 0.0
        %809 = vmatprep.subr.mxu0 0.0
        %810 = vmatpush1.xpose.msra.mxu0 0.0
        %811 = vmatprep.subr.mxu0 0.0
        %812 = vmatpush1.xpose.msra.mxu0 0.0
        %813 = vmatprep.subr.mxu0 0.0
        %814 = vmatpush1.xpose.msra.mxu0 0.0
        %815 = vmatprep.subr.mxu0 0.0
        %816 = vmatpush1.xpose.msra.mxu0 0.0
        %817 = vmatprep.subr.mxu0 0.0
        %818 = vmatpush1.xpose.msra.mxu0 0.0
        %819 = vmatprep.subr.mxu0 0.0
        %820 = vmatpush1.xpose.msra.mxu0 0.0
        %821 = vmatprep.subr.mxu0 0.0
        %822 = vmatpush1.xpose.msra.mxu0 0.0
        %823 = vmatprep.subr.mxu0 0.0
        %824 = vmatpush1.xpose.msra.mxu0 0.0
        %825 = vmatprep.subr.mxu0 0.0
        %826 = vmatpush1.xpose.msra.mxu0 0.0
        %827 = vmatprep.subr.mxu0 0.0
        %828 = vmatpush1.xpose.msra.mxu0 0.0
        %829 = vmatprep.subr.mxu0 0.0
        %830 = vmatpush1.xpose.msra.mxu0 0.0
        %831 = vmatprep.subr.mxu0 0.0
        %832 = vmatpush1.xpose.msra.mxu0 0.0
        %833 = vmatprep.subr.mxu0 0.0
        %834 = vmatpush1.xpose.msra.mxu0 0.0
        %835 = vmatprep.subr.mxu0 0.0
        %836 = vmatpush1.xpose.msra.mxu0 0.0
        %837 = vmatprep.subr.mxu0 0.0
        %838 = vmatpush1.xpose.msra.mxu0 0.0
        %839 = vmatprep.mubr.f32.mxu0 0.0
        %840 = vmatmul.mubr.f32.gmra.mrb[0].mxu0 %v770
        %v841 = vpop.f32.mrb[0].mxu0
        %v842 = vadd.f32 0.0, %v841
        %v843 = vpop.f32.mrb[0].mxu0
        %844 = vdwg.mxu0
        %v846 = vsel %vm312, %v303, 0
        %v849 = vsel %vm312, %v311, 0
        %851 = vmatprep.subr.mxu0 0.0
        %852 = vmatpush1.xpose.msra.mxu0 %v849
        %853 = vmatprep.subr.mxu0 0.0
        %854 = vmatpush1.xpose.msra.mxu0 0.0
        %855 = vmatprep.subr.mxu0 0.0
        %856 = vmatpush1.xpose.msra.mxu0 0.0
        %857 = vmatprep.subr.mxu0 0.0
        %858 = vmatpush1.xpose.msra.mxu0 0.0
        %859 = vmatprep.subr.mxu0 0.0
        %860 = vmatpush1.xpose.msra.mxu0 0.0
        %861 = vmatprep.subr.mxu0 0.0
        %862 = vmatpush1.xpose.msra.mxu0 0.0
        %863 = vmatprep.subr.mxu0 0.0
        %864 = vmatpush1.xpose.msra.mxu0 0.0
        %865 = vmatprep.subr.mxu0 0.0
        %866 = vmatpush1.xpose.msra.mxu0 0.0
        %867 = vmatprep.subr.mxu0 0.0
        %868 = vmatpush1.xpose.msra.mxu0 0.0
        %869 = vmatprep.subr.mxu0 0.0
        %870 = vmatpush1.xpose.msra.mxu0 0.0
        %871 = vmatprep.subr.mxu0 0.0
        %872 = vmatpush1.xpose.msra.mxu0 0.0
        %873 = vmatprep.subr.mxu0 0.0
        %874 = vmatpush1.xpose.msra.mxu0 0.0
        %875 = vmatprep.subr.mxu0 0.0
        %876 = vmatpush1.xpose.msra.mxu0 0.0
        %877 = vmatprep.subr.mxu0 0.0
        %878 = vmatpush1.xpose.msra.mxu0 0.0
        %879 = vmatprep.subr.mxu0 0.0
        %880 = vmatpush1.xpose.msra.mxu0 0.0
        %881 = vmatprep.subr.mxu0 0.0
        %882 = vmatpush1.xpose.msra.mxu0 0.0
        %883 = vmatprep.subr.mxu0 0.0
        %884 = vmatpush1.xpose.msra.mxu0 0.0
        %885 = vmatprep.subr.mxu0 0.0
        %886 = vmatpush1.xpose.msra.mxu0 0.0
        %887 = vmatprep.subr.mxu0 0.0
        %888 = vmatpush1.xpose.msra.mxu0 0.0
        %889 = vmatprep.subr.mxu0 0.0
        %890 = vmatpush1.xpose.msra.mxu0 0.0
        %891 = vmatprep.subr.mxu0 0.0
        %892 = vmatpush1.xpose.msra.mxu0 0.0
        %893 = vmatprep.subr.mxu0 0.0
        %894 = vmatpush1.xpose.msra.mxu0 0.0
        %895 = vmatprep.subr.mxu0 0.0
        %896 = vmatpush1.xpose.msra.mxu0 0.0
        %897 = vmatprep.subr.mxu0 0.0
        %898 = vmatpush1.xpose.msra.mxu0 0.0
        %899 = vmatprep.subr.mxu0 0.0
        %900 = vmatpush1.xpose.msra.mxu0 0.0
        %901 = vmatprep.subr.mxu0 0.0
        %902 = vmatpush1.xpose.msra.mxu0 0.0
        %903 = vmatprep.subr.mxu0 0.0
        %904 = vmatpush1.xpose.msra.mxu0 0.0
        %905 = vmatprep.subr.mxu0 0.0
        %906 = vmatpush1.xpose.msra.mxu0 0.0
        %907 = vmatprep.subr.mxu0 0.0
        %908 = vmatpush1.xpose.msra.mxu0 0.0
        %909 = vmatprep.subr.mxu0 0.0
        %910 = vmatpush1.xpose.msra.mxu0 0.0
        %911 = vmatprep.subr.mxu0 0.0
        %912 = vmatpush1.xpose.msra.mxu0 0.0
        %913 = vmatprep.subr.mxu0 0.0
        %914 = vmatpush1.xpose.msra.mxu0 0.0
        %915 = vmatprep.mubr.f32.mxu0 0.0
        %916 = vmatmul.mubr.f32.gmra.mrb[0].mxu0 %v846
        %v917 = vpop.f32.mrb[0].mxu0
        %v918 = vadd.f32 0.0, %v917
        %v919 = vpop.f32.mrb[0].mxu0
        %920 = vdwg.mxu0
        %vm921 = vcmask 64512
        %v922 = vsel %vm921, %v386, -inf
        %923 = vmax.xlane.f32.xlu0 %v922
        %v924 = vpop.xlane.xlu0 %923
        %v925 = vsel %vm921, %v462, -inf
        %926 = vmax.xlane.f32.xlu0 %v925
        %v927 = vpop.xlane.xlu0 %926
        %v928 = vsel %vm921, %v538, -inf
        %929 = vmax.xlane.f32.xlu0 %v928
        %v930 = vpop.xlane.xlu0 %929
        %v931 = vsel %vm921, %v614, -inf
        %932 = vmax.xlane.f32.xlu0 %v931
        %v933 = vpop.xlane.xlu0 %932
        %v934 = vsel %vm921, %v690, -inf
        %935 = vmax.xlane.f32.xlu0 %v934
        %v936 = vpop.xlane.xlu0 %935
        %v937 = vsel %vm921, %v766, -inf
        %938 = vmax.xlane.f32.xlu0 %v937
        %v939 = vpop.xlane.xlu0 %938
        %v940 = vsel %vm921, %v842, -inf
        %941 = vmax.xlane.f32.xlu0 %v940
        %v942 = vpop.xlane.xlu0 %941
        %v943 = vsel %vm921, %v918, -inf
        %944 = vmax.xlane.f32.xlu0 %v943
        %v945 = vpop.xlane.xlu0 %944
        %v946 = vsub.f32 %v386, %v924
        %v947 = vsub.f32 %v462, %v927
        %v948 = vsub.f32 %v538, %v930
        %v949 = vsub.f32 %v614, %v933
        %v950 = vsub.f32 %v690, %v936
        %v951 = vsub.f32 %v766, %v939
        %v952 = vsub.f32 %v842, %v942
        %v953 = vsub.f32 %v918, %v945
        %v954 = vmul.f32 %v946, 1.442695
        %v955 = vpow.pop %v954
        %v956 = vmul.f32 %v947, 1.442695
        %v957 = vpow.pop %v956
        %v958 = vmul.f32 %v948, 1.442695
        %v959 = vpow.pop %v958
        %v960 = vmul.f32 %v949, 1.442695
        %v961 = vpow.pop %v960
        %v962 = vmul.f32 %v950, 1.442695
        %v963 = vpow.pop %v962
        %v964 = vmul.f32 %v951, 1.442695
        %v965 = vpow.pop %v964
        %v966 = vmul.f32 %v952, 1.442695
        %v967 = vpow.pop %v966
        %v968 = vmul.f32 %v953, 1.442695
        %v969 = vpow.pop %v968
        %v970 = vsel %vm921, %v955, 0.0
        %971 = vadd.xlane.f32.xlu0 %v970
        %v972 = vpop.xlane.xlu0 %971
        %v973 = vsel %vm921, %v957, 0.0
        %974 = vadd.xlane.f32.xlu0 %v973
        %v975 = vpop.xlane.xlu0 %974
        %v976 = vsel %vm921, %v959, 0.0
        %977 = vadd.xlane.f32.xlu0 %v976
        %v978 = vpop.xlane.xlu0 %977
        %v979 = vsel %vm921, %v961, 0.0
        %980 = vadd.xlane.f32.xlu0 %v979
        %v981 = vpop.xlane.xlu0 %980
        %v982 = vsel %vm921, %v963, 0.0
        %983 = vadd.xlane.f32.xlu0 %v982
        %v984 = vpop.xlane.xlu0 %983
        %v985 = vsel %vm921, %v965, 0.0
        %986 = vadd.xlane.f32.xlu0 %v985
        %v987 = vpop.xlane.xlu0 %986
        %v988 = vsel %vm921, %v967, 0.0
        %989 = vadd.xlane.f32.xlu0 %v988
        %v990 = vpop.xlane.xlu0 %989
        %v991 = vsel %vm921, %v969, 0.0
        %992 = vadd.xlane.f32.xlu0 %v991
        %v993 = vpop.xlane.xlu0 %992
        %v994 = vrcp.pop %v972
        %v995 = vmul.f32 %v955, %v994
        %v996 = vrcp.pop %v975
        %v997 = vmul.f32 %v957, %v996
        %v998 = vrcp.pop %v978
        %v999 = vmul.f32 %v959, %v998
        %v1000 = vrcp.pop %v981
        %v1001 = vmul.f32 %v961, %v1000
        %v1002 = vrcp.pop %v984
        %v1003 = vmul.f32 %v963, %v1002
        %v1004 = vrcp.pop %v987
        %v1005 = vmul.f32 %v965, %v1004
        %v1006 = vrcp.pop %v990
        %v1007 = vmul.f32 %v967, %v1006
        %v1008 = vrcp.pop %v993
        %v1009 = vmul.f32 %v969, %v1008
        %v1010 = vld [vmem:[%s259] sm:$0xff]
        %v1011 = vld [vmem:[%s259 + $0x8] sm:$0xff]
        %v1012 = vld [vmem:[%s259 + $0x10] sm:$0xff]
        %v1013 = vld [vmem:[%s259 + $0x18] sm:$0xff]
        %v1014 = vld [vmem:[%s259 + $0x20] sm:$0xff]
        %v1015 = vld [vmem:[%s259 + $0x28] sm:$0xff]
        %v1016 = vld [vmem:[%s259 + $0x30] sm:$0xff]
        %v1017 = vld [vmem:[%s259 + $0x38] sm:$0xff]
        %v1019 = vsel %vm921, %v995, 0
        %1021 = vmatprep.subr.mxu0 0.0
        %1022 = vmatpush1.msra.mxu0 %v1010
        %1023 = vmatprep.subr.mxu0 0.0
        %1024 = vmatpush1.msra.mxu0 0.0
        %1025 = vmatprep.subr.mxu0 0.0
        %1026 = vmatpush1.msra.mxu0 0.0
        %1027 = vmatprep.subr.mxu0 0.0
        %1028 = vmatpush1.msra.mxu0 0.0
        %1029 = vmatprep.subr.mxu0 0.0
        %1030 = vmatpush1.msra.mxu0 0.0
        %1031 = vmatprep.subr.mxu0 0.0
        %1032 = vmatpush1.msra.mxu0 0.0
        %1033 = vmatprep.subr.mxu0 0.0
        %1034 = vmatpush1.msra.mxu0 0.0
        %1035 = vmatprep.subr.mxu0 0.0
        %1036 = vmatpush1.msra.mxu0 0.0
        %1037 = vmatprep.subr.mxu0 0.0
        %1038 = vmatpush1.msra.mxu0 0.0
        %1039 = vmatprep.subr.mxu0 0.0
        %1040 = vmatpush1.msra.mxu0 0.0
        %1041 = vmatprep.subr.mxu0 0.0
        %1042 = vmatpush1.msra.mxu0 0.0
        %1043 = vmatprep.subr.mxu0 0.0
        %1044 = vmatpush1.msra.mxu0 0.0
        %1045 = vmatprep.subr.mxu0 0.0
        %1046 = vmatpush1.msra.mxu0 0.0
        %1047 = vmatprep.subr.mxu0 0.0
        %1048 = vmatpush1.msra.mxu0 0.0
        %1049 = vmatprep.subr.mxu0 0.0
        %1050 = vmatpush1.msra.mxu0 0.0
        %1051 = vmatprep.subr.mxu0 0.0
        %1052 = vmatpush1.msra.mxu0 0.0
        %1053 = vmatprep.subr.mxu0 0.0
        %1054 = vmatpush1.msra.mxu0 0.0
        %1055 = vmatprep.subr.mxu0 0.0
        %1056 = vmatpush1.msra.mxu0 0.0
        %1057 = vmatprep.subr.mxu0 0.0
        %1058 = vmatpush1.msra.mxu0 0.0
        %1059 = vmatprep.subr.mxu0 0.0
        %1060 = vmatpush1.msra.mxu0 0.0
        %1061 = vmatprep.subr.mxu0 0.0
        %1062 = vmatpush1.msra.mxu0 0.0
        %1063 = vmatprep.subr.mxu0 0.0
        %1064 = vmatpush1.msra.mxu0 0.0
        %1065 = vmatprep.subr.mxu0 0.0
        %1066 = vmatpush1.msra.mxu0 0.0
        %1067 = vmatprep.subr.mxu0 0.0
        %1068 = vmatpush1.msra.mxu0 0.0
        %1069 = vmatprep.subr.mxu0 0.0
        %1070 = vmatpush1.msra.mxu0 0.0
        %1071 = vmatprep.subr.mxu0 0.0
        %1072 = vmatpush1.msra.mxu0 0.0
        %1073 = vmatprep.subr.mxu0 0.0
        %1074 = vmatpush1.msra.mxu0 0.0
        %1075 = vmatprep.subr.mxu0 0.0
        %1076 = vmatpush1.msra.mxu0 0.0
        %1077 = vmatprep.subr.mxu0 0.0
        %1078 = vmatpush1.msra.mxu0 0.0
        %1079 = vmatprep.subr.mxu0 0.0
        %1080 = vmatpush1.msra.mxu0 0.0
        %1081 = vmatprep.subr.mxu0 0.0
        %1082 = vmatpush1.msra.mxu0 0.0
        %1083 = vmatprep.subr.mxu0 0.0
        %1084 = vmatpush1.msra.mxu0 0.0
        %1085 = vmatprep.mubr.f32.mxu0 0.0
        %1086 = vmatmul.mubr.f32.gmra.mrb[0].mxu0 %v1019
        %v1087 = vpop.f32.mrb[0].mxu0
        %v1088 = vadd.f32 0.0, %v1087
        %v1089 = vpop.f32.mrb[0].mxu0
        %1090 = vdwg.mxu0
        %v1092 = vsel %vm921, %v997, 0
        %1094 = vmatprep.subr.mxu0 0.0
        %1095 = vmatpush1.msra.mxu0 %v1011
        %1096 = vmatprep.subr.mxu0 0.0
        %1097 = vmatpush1.msra.mxu0 0.0
        %1098 = vmatprep.subr.mxu0 0.0
        %1099 = vmatpush1.msra.mxu0 0.0
        %1100 = vmatprep.subr.mxu0 0.0
        %1101 = vmatpush1.msra.mxu0 0.0
        %1102 = vmatprep.subr.mxu0 0.0
        %1103 = vmatpush1.msra.mxu0 0.0
        %1104 = vmatprep.subr.mxu0 0.0
        %1105 = vmatpush1.msra.mxu0 0.0
        %1106 = vmatprep.subr.mxu0 0.0
        %1107 = vmatpush1.msra.mxu0 0.0
        %1108 = vmatprep.subr.mxu0 0.0
        %1109 = vmatpush1.msra.mxu0 0.0
        %1110 = vmatprep.subr.mxu0 0.0
        %1111 = vmatpush1.msra.mxu0 0.0
        %1112 = vmatprep.subr.mxu0 0.0
        %1113 = vmatpush1.msra.mxu0 0.0
        %1114 = vmatprep.subr.mxu0 0.0
        %1115 = vmatpush1.msra.mxu0 0.0
        %1116 = vmatprep.subr.mxu0 0.0
        %1117 = vmatpush1.msra.mxu0 0.0
        %1118 = vmatprep.subr.mxu0 0.0
        %1119 = vmatpush1.msra.mxu0 0.0
        %1120 = vmatprep.subr.mxu0 0.0
        %1121 = vmatpush1.msra.mxu0 0.0
        %1122 = vmatprep.subr.mxu0 0.0
        %1123 = vmatpush1.msra.mxu0 0.0
        %1124 = vmatprep.subr.mxu0 0.0
        %1125 = vmatpush1.msra.mxu0 0.0
        %1126 = vmatprep.subr.mxu0 0.0
        %1127 = vmatpush1.msra.mxu0 0.0
        %1128 = vmatprep.subr.mxu0 0.0
        %1129 = vmatpush1.msra.mxu0 0.0
        %1130 = vmatprep.subr.mxu0 0.0
        %1131 = vmatpush1.msra.mxu0 0.0
        %1132 = vmatprep.subr.mxu0 0.0
        %1133 = vmatpush1.msra.mxu0 0.0
        %1134 = vmatprep.subr.mxu0 0.0
        %1135 = vmatpush1.msra.mxu0 0.0
        %1136 = vmatprep.subr.mxu0 0.0
        %1137 = vmatpush1.msra.mxu0 0.0
        %1138 = vmatprep.subr.mxu0 0.0
        %1139 = vmatpush1.msra.mxu0 0.0
        %1140 = vmatprep.subr.mxu0 0.0
        %1141 = vmatpush1.msra.mxu0 0.0
        %1142 = vmatprep.subr.mxu0 0.0
        %1143 = vmatpush1.msra.mxu0 0.0
        %1144 = vmatprep.subr.mxu0 0.0
        %1145 = vmatpush1.msra.mxu0 0.0
        %1146 = vmatprep.subr.mxu0 0.0
        %1147 = vmatpush1.msra.mxu0 0.0
        %1148 = vmatprep.subr.mxu0 0.0
        %1149 = vmatpush1.msra.mxu0 0.0
        %1150 = vmatprep.subr.mxu0 0.0
        %1151 = vmatpush1.msra.mxu0 0.0
        %1152 = vmatprep.subr.mxu0 0.0
        %1153 = vmatpush1.msra.mxu0 0.0
        %1154 = vmatprep.subr.mxu0 0.0
        %1155 = vmatpush1.msra.mxu0 0.0
        %1156 = vmatprep.subr.mxu0 0.0
        %1157 = vmatpush1.msra.mxu0 0.0
        %1158 = vmatprep.mubr.f32.mxu0 0.0
        %1159 = vmatmul.mubr.f32.gmra.mrb[0].mxu0 %v1092
        %v1160 = vpop.f32.mrb[0].mxu0
        %v1161 = vadd.f32 0.0, %v1160
        %v1162 = vpop.f32.mrb[0].mxu0
        %1163 = vdwg.mxu0
        %v1165 = vsel %vm921, %v999, 0
        %1167 = vmatprep.subr.mxu0 0.0
        %1168 = vmatpush1.msra.mxu0 %v1012
        %1169 = vmatprep.subr.mxu0 0.0
        %1170 = vmatpush1.msra.mxu0 0.0
        %1171 = vmatprep.subr.mxu0 0.0
        %1172 = vmatpush1.msra.mxu0 0.0
        %1173 = vmatprep.subr.mxu0 0.0
        %1174 = vmatpush1.msra.mxu0 0.0
        %1175 = vmatprep.subr.mxu0 0.0
        %1176 = vmatpush1.msra.mxu0 0.0
        %1177 = vmatprep.subr.mxu0 0.0
        %1178 = vmatpush1.msra.mxu0 0.0
        %1179 = vmatprep.subr.mxu0 0.0
        %1180 = vmatpush1.msra.mxu0 0.0
        %1181 = vmatprep.subr.mxu0 0.0
        %1182 = vmatpush1.msra.mxu0 0.0
        %1183 = vmatprep.subr.mxu0 0.0
        %1184 = vmatpush1.msra.mxu0 0.0
        %1185 = vmatprep.subr.mxu0 0.0
        %1186 = vmatpush1.msra.mxu0 0.0
        %1187 = vmatprep.subr.mxu0 0.0
        %1188 = vmatpush1.msra.mxu0 0.0
        %1189 = vmatprep.subr.mxu0 0.0
        %1190 = vmatpush1.msra.mxu0 0.0
        %1191 = vmatprep.subr.mxu0 0.0
        %1192 = vmatpush1.msra.mxu0 0.0
        %1193 = vmatprep.subr.mxu0 0.0
        %1194 = vmatpush1.msra.mxu0 0.0
        %1195 = vmatprep.subr.mxu0 0.0
        %1196 = vmatpush1.msra.mxu0 0.0
        %1197 = vmatprep.subr.mxu0 0.0
        %1198 = vmatpush1.msra.mxu0 0.0
        %1199 = vmatprep.subr.mxu0 0.0
        %1200 = vmatpush1.msra.mxu0 0.0
        %1201 = vmatprep.subr.mxu0 0.0
        %1202 = vmatpush1.msra.mxu0 0.0
        %1203 = vmatprep.subr.mxu0 0.0
        %1204 = vmatpush1.msra.mxu0 0.0
        %1205 = vmatprep.subr.mxu0 0.0
        %1206 = vmatpush1.msra.mxu0 0.0
        %1207 = vmatprep.subr.mxu0 0.0
        %1208 = vmatpush1.msra.mxu0 0.0
        %1209 = vmatprep.subr.mxu0 0.0
        %1210 = vmatpush1.msra.mxu0 0.0
        %1211 = vmatprep.subr.mxu0 0.0
        %1212 = vmatpush1.msra.mxu0 0.0
        %1213 = vmatprep.subr.mxu0 0.0
        %1214 = vmatpush1.msra.mxu0 0.0
        %1215 = vmatprep.subr.mxu0 0.0
        %1216 = vmatpush1.msra.mxu0 0.0
        %1217 = vmatprep.subr.mxu0 0.0
        %1218 = vmatpush1.msra.mxu0 0.0
        %1219 = vmatprep.subr.mxu0 0.0
        %1220 = vmatpush1.msra.mxu0 0.0
        %1221 = vmatprep.subr.mxu0 0.0
        %1222 = vmatpush1.msra.mxu0 0.0
        %1223 = vmatprep.subr.mxu0 0.0
        %1224 = vmatpush1.msra.mxu0 0.0
        %1225 = vmatprep.subr.mxu0 0.0
        %1226 = vmatpush1.msra.mxu0 0.0
        %1227 = vmatprep.subr.mxu0 0.0
        %1228 = vmatpush1.msra.mxu0 0.0
        %1229 = vmatprep.subr.mxu0 0.0
        %1230 = vmatpush1.msra.mxu0 0.0
        %1231 = vmatprep.mubr.f32.mxu0 0.0
        %1232 = vmatmul.mubr.f32.gmra.mrb[0].mxu0 %v1165
        %v1233 = vpop.f32.mrb[0].mxu0
        %v1234 = vadd.f32 0.0, %v1233
        %v1235 = vpop.f32.mrb[0].mxu0
        %1236 = vdwg.mxu0
        %v1238 = vsel %vm921, %v1001, 0
        %1240 = vmatprep.subr.mxu0 0.0
        %1241 = vmatpush1.msra.mxu0 %v1013
        %1242 = vmatprep.subr.mxu0 0.0
        %1243 = vmatpush1.msra.mxu0 0.0
        %1244 = vmatprep.subr.mxu0 0.0
        %1245 = vmatpush1.msra.mxu0 0.0
        %1246 = vmatprep.subr.mxu0 0.0
        %1247 = vmatpush1.msra.mxu0 0.0
        %1248 = vmatprep.subr.mxu0 0.0
        %1249 = vmatpush1.msra.mxu0 0.0
        %1250 = vmatprep.subr.mxu0 0.0
        %1251 = vmatpush1.msra.mxu0 0.0
        %1252 = vmatprep.subr.mxu0 0.0
        %1253 = vmatpush1.msra.mxu0 0.0
        %1254 = vmatprep.subr.mxu0 0.0
        %1255 = vmatpush1.msra.mxu0 0.0
        %1256 = vmatprep.subr.mxu0 0.0
        %1257 = vmatpush1.msra.mxu0 0.0
        %1258 = vmatprep.subr.mxu0 0.0
        %1259 = vmatpush1.msra.mxu0 0.0
        %1260 = vmatprep.subr.mxu0 0.0
        %1261 = vmatpush1.msra.mxu0 0.0
        %1262 = vmatprep.subr.mxu0 0.0
        %1263 = vmatpush1.msra.mxu0 0.0
        %1264 = vmatprep.subr.mxu0 0.0
        %1265 = vmatpush1.msra.mxu0 0.0
        %1266 = vmatprep.subr.mxu0 0.0
        %1267 = vmatpush1.msra.mxu0 0.0
        %1268 = vmatprep.subr.mxu0 0.0
        %1269 = vmatpush1.msra.mxu0 0.0
        %1270 = vmatprep.subr.mxu0 0.0
        %1271 = vmatpush1.msra.mxu0 0.0
        %1272 = vmatprep.subr.mxu0 0.0
        %1273 = vmatpush1.msra.mxu0 0.0
        %1274 = vmatprep.subr.mxu0 0.0
        %1275 = vmatpush1.msra.mxu0 0.0
        %1276 = vmatprep.subr.mxu0 0.0
        %1277 = vmatpush1.msra.mxu0 0.0
        %1278 = vmatprep.subr.mxu0 0.0
        %1279 = vmatpush1.msra.mxu0 0.0
        %1280 = vmatprep.subr.mxu0 0.0
        %1281 = vmatpush1.msra.mxu0 0.0
        %1282 = vmatprep.subr.mxu0 0.0
        %1283 = vmatpush1.msra.mxu0 0.0
        %1284 = vmatprep.subr.mxu0 0.0
        %1285 = vmatpush1.msra.mxu0 0.0
        %1286 = vmatprep.subr.mxu0 0.0
        %1287 = vmatpush1.msra.mxu0 0.0
        %1288 = vmatprep.subr.mxu0 0.0
        %1289 = vmatpush1.msra.mxu0 0.0
        %1290 = vmatprep.subr.mxu0 0.0
        %1291 = vmatpush1.msra.mxu0 0.0
        %1292 = vmatprep.subr.mxu0 0.0
        %1293 = vmatpush1.msra.mxu0 0.0
        %1294 = vmatprep.subr.mxu0 0.0
        %1295 = vmatpush1.msra.mxu0 0.0
        %1296 = vmatprep.subr.mxu0 0.0
        %1297 = vmatpush1.msra.mxu0 0.0
        %1298 = vmatprep.subr.mxu0 0.0
        %1299 = vmatpush1.msra.mxu0 0.0
        %1300 = vmatprep.subr.mxu0 0.0
        %1301 = vmatpush1.msra.mxu0 0.0
        %1302 = vmatprep.subr.mxu0 0.0
        %1303 = vmatpush1.msra.mxu0 0.0
        %1304 = vmatprep.mubr.f32.mxu0 0.0
        %1305 = vmatmul.mubr.f32.gmra.mrb[0].mxu0 %v1238
        %v1306 = vpop.f32.mrb[0].mxu0
        %v1307 = vadd.f32 0.0, %v1306
        %v1308 = vpop.f32.mrb[0].mxu0
        %1309 = vdwg.mxu0
        %v1311 = vsel %vm921, %v1003, 0
        %1313 = vmatprep.subr.mxu0 0.0
        %1314 = vmatpush1.msra.mxu0 %v1014
        %1315 = vmatprep.subr.mxu0 0.0
        %1316 = vmatpush1.msra.mxu0 0.0
        %1317 = vmatprep.subr.mxu0 0.0
        %1318 = vmatpush1.msra.mxu0 0.0
        %1319 = vmatprep.subr.mxu0 0.0
        %1320 = vmatpush1.msra.mxu0 0.0
        %1321 = vmatprep.subr.mxu0 0.0
        %1322 = vmatpush1.msra.mxu0 0.0
        %1323 = vmatprep.subr.mxu0 0.0
        %1324 = vmatpush1.msra.mxu0 0.0
        %1325 = vmatprep.subr.mxu0 0.0
        %1326 = vmatpush1.msra.mxu0 0.0
        %1327 = vmatprep.subr.mxu0 0.0
        %1328 = vmatpush1.msra.mxu0 0.0
        %1329 = vmatprep.subr.mxu0 0.0
        %1330 = vmatpush1.msra.mxu0 0.0
        %1331 = vmatprep.subr.mxu0 0.0
        %1332 = vmatpush1.msra.mxu0 0.0
        %1333 = vmatprep.subr.mxu0 0.0
        %1334 = vmatpush1.msra.mxu0 0.0
        %1335 = vmatprep.subr.mxu0 0.0
        %1336 = vmatpush1.msra.mxu0 0.0
        %1337 = vmatprep.subr.mxu0 0.0
        %1338 = vmatpush1.msra.mxu0 0.0
        %1339 = vmatprep.subr.mxu0 0.0
        %1340 = vmatpush1.msra.mxu0 0.0
        %1341 = vmatprep.subr.mxu0 0.0
        %1342 = vmatpush1.msra.mxu0 0.0
        %1343 = vmatprep.subr.mxu0 0.0
        %1344 = vmatpush1.msra.mxu0 0.0
        %1345 = vmatprep.subr.mxu0 0.0
        %1346 = vmatpush1.msra.mxu0 0.0
        %1347 = vmatprep.subr.mxu0 0.0
        %1348 = vmatpush1.msra.mxu0 0.0
        %1349 = vmatprep.subr.mxu0 0.0
        %1350 = vmatpush1.msra.mxu0 0.0
        %1351 = vmatprep.subr.mxu0 0.0
        %1352 = vmatpush1.msra.mxu0 0.0
        %1353 = vmatprep.subr.mxu0 0.0
        %1354 = vmatpush1.msra.mxu0 0.0
        %1355 = vmatprep.subr.mxu0 0.0
        %1356 = vmatpush1.msra.mxu0 0.0
        %1357 = vmatprep.subr.mxu0 0.0
        %1358 = vmatpush1.msra.mxu0 0.0
        %1359 = vmatprep.subr.mxu0 0.0
        %1360 = vmatpush1.msra.mxu0 0.0
        %1361 = vmatprep.subr.mxu0 0.0
        %1362 = vmatpush1.msra.mxu0 0.0
        %1363 = vmatprep.subr.mxu0 0.0
        %1364 = vmatpush1.msra.mxu0 0.0
        %1365 = vmatprep.subr.mxu0 0.0
        %1366 = vmatpush1.msra.mxu0 0.0
        %1367 = vmatprep.subr.mxu0 0.0
        %1368 = vmatpush1.msra.mxu0 0.0
        %1369 = vmatprep.subr.mxu0 0.0
        %1370 = vmatpush1.msra.mxu0 0.0
        %1371 = vmatprep.subr.mxu0 0.0
        %1372 = vmatpush1.msra.mxu0 0.0
        %1373 = vmatprep.subr.mxu0 0.0
        %1374 = vmatpush1.msra.mxu0 0.0
        %1375 = vmatprep.subr.mxu0 0.0
        %1376 = vmatpush1.msra.mxu0 0.0
        %1377 = vmatprep.mubr.f32.mxu0 0.0
        %1378 = vmatmul.mubr.f32.gmra.mrb[0].mxu0 %v1311
        %v1379 = vpop.f32.mrb[0].mxu0
        %v1380 = vadd.f32 0.0, %v1379
        %v1381 = vpop.f32.mrb[0].mxu0
        %1382 = vdwg.mxu0
        %v1384 = vsel %vm921, %v1005, 0
        %1386 = vmatprep.subr.mxu0 0.0
        %1387 = vmatpush1.msra.mxu0 %v1015
        %1388 = vmatprep.subr.mxu0 0.0
        %1389 = vmatpush1.msra.mxu0 0.0
        %1390 = vmatprep.subr.mxu0 0.0
        %1391 = vmatpush1.msra.mxu0 0.0
        %1392 = vmatprep.subr.mxu0 0.0
        %1393 = vmatpush1.msra.mxu0 0.0
        %1394 = vmatprep.subr.mxu0 0.0
        %1395 = vmatpush1.msra.mxu0 0.0
        %1396 = vmatprep.subr.mxu0 0.0
        %1397 = vmatpush1.msra.mxu0 0.0
        %1398 = vmatprep.subr.mxu0 0.0
        %1399 = vmatpush1.msra.mxu0 0.0
        %1400 = vmatprep.subr.mxu0 0.0
        %1401 = vmatpush1.msra.mxu0 0.0
        %1402 = vmatprep.subr.mxu0 0.0
        %1403 = vmatpush1.msra.mxu0 0.0
        %1404 = vmatprep.subr.mxu0 0.0
        %1405 = vmatpush1.msra.mxu0 0.0
        %1406 = vmatprep.subr.mxu0 0.0
        %1407 = vmatpush1.msra.mxu0 0.0
        %1408 = vmatprep.subr.mxu0 0.0
        %1409 = vmatpush1.msra.mxu0 0.0
        %1410 = vmatprep.subr.mxu0 0.0
        %1411 = vmatpush1.msra.mxu0 0.0
        %1412 = vmatprep.subr.mxu0 0.0
        %1413 = vmatpush1.msra.mxu0 0.0
        %1414 = vmatprep.subr.mxu0 0.0
        %1415 = vmatpush1.msra.mxu0 0.0
        %1416 = vmatprep.subr.mxu0 0.0
        %1417 = vmatpush1.msra.mxu0 0.0
        %1418 = vmatprep.subr.mxu0 0.0
        %1419 = vmatpush1.msra.mxu0 0.0
        %1420 = vmatprep.subr.mxu0 0.0
        %1421 = vmatpush1.msra.mxu0 0.0
        %1422 = vmatprep.subr.mxu0 0.0
        %1423 = vmatpush1.msra.mxu0 0.0
        %1424 = vmatprep.subr.mxu0 0.0
        %1425 = vmatpush1.msra.mxu0 0.0
        %1426 = vmatprep.subr.mxu0 0.0
        %1427 = vmatpush1.msra.mxu0 0.0
        %1428 = vmatprep.subr.mxu0 0.0
        %1429 = vmatpush1.msra.mxu0 0.0
        %1430 = vmatprep.subr.mxu0 0.0
        %1431 = vmatpush1.msra.mxu0 0.0
        %1432 = vmatprep.subr.mxu0 0.0
        %1433 = vmatpush1.msra.mxu0 0.0
        %1434 = vmatprep.subr.mxu0 0.0
        %1435 = vmatpush1.msra.mxu0 0.0
        %1436 = vmatprep.subr.mxu0 0.0
        %1437 = vmatpush1.msra.mxu0 0.0
        %1438 = vmatprep.subr.mxu0 0.0
        %1439 = vmatpush1.msra.mxu0 0.0
        %1440 = vmatprep.subr.mxu0 0.0
        %1441 = vmatpush1.msra.mxu0 0.0
        %1442 = vmatprep.subr.mxu0 0.0
        %1443 = vmatpush1.msra.mxu0 0.0
        %1444 = vmatprep.subr.mxu0 0.0
        %1445 = vmatpush1.msra.mxu0 0.0
        %1446 = vmatprep.subr.mxu0 0.0
        %1447 = vmatpush1.msra.mxu0 0.0
        %1448 = vmatprep.subr.mxu0 0.0
        %1449 = vmatpush1.msra.mxu0 0.0
        %1450 = vmatprep.mubr.f32.mxu0 0.0
        %1451 = vmatmul.mubr.f32.gmra.mrb[0].mxu0 %v1384
        %v1452 = vpop.f32.mrb[0].mxu0
        %v1453 = vadd.f32 0.0, %v1452
        %v1454 = vpop.f32.mrb[0].mxu0
        %1455 = vdwg.mxu0
        %v1457 = vsel %vm921, %v1007, 0
        %1459 = vmatprep.subr.mxu0 0.0
        %1460 = vmatpush1.msra.mxu0 %v1016
        %1461 = vmatprep.subr.mxu0 0.0
        %1462 = vmatpush1.msra.mxu0 0.0
        %1463 = vmatprep.subr.mxu0 0.0
        %1464 = vmatpush1.msra.mxu0 0.0
        %1465 = vmatprep.subr.mxu0 0.0
        %1466 = vmatpush1.msra.mxu0 0.0
        %1467 = vmatprep.subr.mxu0 0.0
        %1468 = vmatpush1.msra.mxu0 0.0
        %1469 = vmatprep.subr.mxu0 0.0
        %1470 = vmatpush1.msra.mxu0 0.0
        %1471 = vmatprep.subr.mxu0 0.0
        %1472 = vmatpush1.msra.mxu0 0.0
        %1473 = vmatprep.subr.mxu0 0.0
        %1474 = vmatpush1.msra.mxu0 0.0
        %1475 = vmatprep.subr.mxu0 0.0
        %1476 = vmatpush1.msra.mxu0 0.0
        %1477 = vmatprep.subr.mxu0 0.0
        %1478 = vmatpush1.msra.mxu0 0.0
        %1479 = vmatprep.subr.mxu0 0.0
        %1480 = vmatpush1.msra.mxu0 0.0
        %1481 = vmatprep.subr.mxu0 0.0
        %1482 = vmatpush1.msra.mxu0 0.0
        %1483 = vmatprep.subr.mxu0 0.0
        %1484 = vmatpush1.msra.mxu0 0.0
        %1485 = vmatprep.subr.mxu0 0.0
        %1486 = vmatpush1.msra.mxu0 0.0
        %1487 = vmatprep.subr.mxu0 0.0
        %1488 = vmatpush1.msra.mxu0 0.0
        %1489 = vmatprep.subr.mxu0 0.0
        %1490 = vmatpush1.msra.mxu0 0.0
        %1491 = vmatprep.subr.mxu0 0.0
        %1492 = vmatpush1.msra.mxu0 0.0
        %1493 = vmatprep.subr.mxu0 0.0
        %1494 = vmatpush1.msra.mxu0 0.0
        %1495 = vmatprep.subr.mxu0 0.0
        %1496 = vmatpush1.msra.mxu0 0.0
        %1497 = vmatprep.subr.mxu0 0.0
        %1498 = vmatpush1.msra.mxu0 0.0
        %1499 = vmatprep.subr.mxu0 0.0
        %1500 = vmatpush1.msra.mxu0 0.0
        %1501 = vmatprep.subr.mxu0 0.0
        %1502 = vmatpush1.msra.mxu0 0.0
        %1503 = vmatprep.subr.mxu0 0.0
        %1504 = vmatpush1.msra.mxu0 0.0
        %1505 = vmatprep.subr.mxu0 0.0
        %1506 = vmatpush1.msra.mxu0 0.0
        %1507 = vmatprep.subr.mxu0 0.0
        %1508 = vmatpush1.msra.mxu0 0.0
        %1509 = vmatprep.subr.mxu0 0.0
        %1510 = vmatpush1.msra.mxu0 0.0
        %1511 = vmatprep.subr.mxu0 0.0
        %1512 = vmatpush1.msra.mxu0 0.0
        %1513 = vmatprep.subr.mxu0 0.0
        %1514 = vmatpush1.msra.mxu0 0.0
        %1515 = vmatprep.subr.mxu0 0.0
        %1516 = vmatpush1.msra.mxu0 0.0
        %1517 = vmatprep.subr.mxu0 0.0
        %1518 = vmatpush1.msra.mxu0 0.0
        %1519 = vmatprep.subr.mxu0 0.0
        %1520 = vmatpush1.msra.mxu0 0.0
        %1521 = vmatprep.subr.mxu0 0.0
        %1522 = vmatpush1.msra.mxu0 0.0
        %1523 = vmatprep.mubr.f32.mxu0 0.0
        %1524 = vmatmul.mubr.f32.gmra.mrb[0].mxu0 %v1457
        %v1525 = vpop.f32.mrb[0].mxu0
        %v1526 = vadd.f32 0.0, %v1525
        %v1527 = vpop.f32.mrb[0].mxu0
        %1528 = vdwg.mxu0
        %v1530 = vsel %vm921, %v1009, 0
        %1532 = vmatprep.subr.mxu0 0.0
        %1533 = vmatpush1.msra.mxu0 %v1017
        %1534 = vmatprep.subr.mxu0 0.0
        %1535 = vmatpush1.msra.mxu0 0.0
        %1536 = vmatprep.subr.mxu0 0.0
        %1537 = vmatpush1.msra.mxu0 0.0
        %1538 = vmatprep.subr.mxu0 0.0
        %1539 = vmatpush1.msra.mxu0 0.0
        %1540 = vmatprep.subr.mxu0 0.0
        %1541 = vmatpush1.msra.mxu0 0.0
        %1542 = vmatprep.subr.mxu0 0.0
        %1543 = vmatpush1.msra.mxu0 0.0
        %1544 = vmatprep.subr.mxu0 0.0
        %1545 = vmatpush1.msra.mxu0 0.0
        %1546 = vmatprep.subr.mxu0 0.0
        %1547 = vmatpush1.msra.mxu0 0.0
        %1548 = vmatprep.subr.mxu0 0.0
        %1549 = vmatpush1.msra.mxu0 0.0
        %1550 = vmatprep.subr.mxu0 0.0
        %1551 = vmatpush1.msra.mxu0 0.0
        %1552 = vmatprep.subr.mxu0 0.0
        %1553 = vmatpush1.msra.mxu0 0.0
        %1554 = vmatprep.subr.mxu0 0.0
        %1555 = vmatpush1.msra.mxu0 0.0
        %1556 = vmatprep.subr.mxu0 0.0
        %1557 = vmatpush1.msra.mxu0 0.0
        %1558 = vmatprep.subr.mxu0 0.0
        %1559 = vmatpush1.msra.mxu0 0.0
        %1560 = vmatprep.subr.mxu0 0.0
        %1561 = vmatpush1.msra.mxu0 0.0
        %1562 = vmatprep.subr.mxu0 0.0
        %1563 = vmatpush1.msra.mxu0 0.0
        %1564 = vmatprep.subr.mxu0 0.0
        %1565 = vmatpush1.msra.mxu0 0.0
        %1566 = vmatprep.subr.mxu0 0.0
        %1567 = vmatpush1.msra.mxu0 0.0
        %1568 = vmatprep.subr.mxu0 0.0
        %1569 = vmatpush1.msra.mxu0 0.0
        %1570 = vmatprep.subr.mxu0 0.0
        %1571 = vmatpush1.msra.mxu0 0.0
        %1572 = vmatprep.subr.mxu0 0.0
        %1573 = vmatpush1.msra.mxu0 0.0
        %1574 = vmatprep.subr.mxu0 0.0
        %1575 = vmatpush1.msra.mxu0 0.0
        %1576 = vmatprep.subr.mxu0 0.0
        %1577 = vmatpush1.msra.mxu0 0.0
        %1578 = vmatprep.subr.mxu0 0.0
        %1579 = vmatpush1.msra.mxu0 0.0
        %1580 = vmatprep.subr.mxu0 0.0
        %1581 = vmatpush1.msra.mxu0 0.0
        %1582 = vmatprep.subr.mxu0 0.0
        %1583 = vmatpush1.msra.mxu0 0.0
        %1584 = vmatprep.subr.mxu0 0.0
        %1585 = vmatpush1.msra.mxu0 0.0
        %1586 = vmatprep.subr.mxu0 0.0
        %1587 = vmatpush1.msra.mxu0 0.0
        %1588 = vmatprep.subr.mxu0 0.0
        %1589 = vmatpush1.msra.mxu0 0.0
        %1590 = vmatprep.subr.mxu0 0.0
        %1591 = vmatpush1.msra.mxu0 0.0
        %1592 = vmatprep.subr.mxu0 0.0
        %1593 = vmatpush1.msra.mxu0 0.0
        %1594 = vmatprep.subr.mxu0 0.0
        %1595 = vmatpush1.msra.mxu0 0.0
        %1596 = vmatprep.mubr.f32.mxu0 0.0
        %1597 = vmatmul.mubr.f32.gmra.mrb[0].mxu0 %v1530
        %v1598 = vpop.f32.mrb[0].mxu0
        %v1599 = vadd.f32 0.0, %v1598
        %v1600 = vpop.f32.mrb[0].mxu0
        %1601 = vdwg.mxu0
        %1602 = vst.msk [vmem:[%s291] sm:$0xff] %vm312, %v1088
        %1603 = vst.msk [vmem:[%s291 + $0x8] sm:$0xff] %vm312, %v1161
        %1604 = vst.msk [vmem:[%s291 + $0x10] sm:$0xff] %vm312, %v1234
        %1605 = vst.msk [vmem:[%s291 + $0x18] sm:$0xff] %vm312, %v1307
        %1606 = vst.msk [vmem:[%s291 + $0x20] sm:$0xff] %vm312, %v1380
        %1607 = vst.msk [vmem:[%s291 + $0x28] sm:$0xff] %vm312, %v1453
        %1608 = vst.msk [vmem:[%s291 + $0x30] sm:$0xff] %vm312, %v1526
        %1609 = vst.msk [vmem:[%s291 + $0x38] sm:$0xff] %vm312, %v1599
        %s1610 = sand.u32 %s129, 1
        %s1611 = scalar_lea.sflag [#allocation4], %s1610
        %s1612 = sand.u32 %s129, 1
        %s1613 = smul.addr %s1612, 64
        %s1614 = scalar_lea.vmem [#allocation8], %s1613
        // Predicated region
        $region45: #{tpu_custom_call.1} parent=31 // pred_check
          %p1615 = pneg %p139
        $region46: #{tpu_custom_call.1} parent=31 // pred_check_branch
          %1617 = sbr.rel (%p1615) target = $region48
        $region47: #{tpu_custom_call.1} parent=31 // pred_region
          %s1618 = smul.u32 8, %s28
          %s1620 = ssub.s32 1024, 1024
          %1621 = vsyncadd %s1611, %s1620
          %s1622 = smul.addr %s27, 8
          %s1623 = sadd.s32 %s1618, %s1622
          %s1624 = smul.addr %s1623, 128
          %s1625 = scalar_lea.hbm %s3, %s1624
          %s1626 = sshll.u32 %s1614, 4
          %s1627 = int_to_ptr.vmem [resolvable:$true] %s1626
          %1632 = dma.vmem_to_hbm [thread:$0]  %s1627, 1024, %s1625, %s1611, 128, 128, 8
        $region48: #{tpu_custom_call.1} parent=31 // pred_fallthru
          _
      $region32: #{tpu_custom_call.1} parent=5 // pred_fallthru
        _
      %p1633 = scmp.le.s32.totalorder 2, %s18
      // Predicated region
      $region49: #{tpu_custom_call.1} parent=5 // pred_check
        %p1634 = pneg %p1633
      $region50: #{tpu_custom_call.1} parent=5 // pred_check_branch
        %1636 = sbr.rel (%p1634) target = $region52
      $region51: #{tpu_custom_call.1} parent=5 // pred_region
        %s1637 = ssub.s32 %s18, 2
        // Predicated region
        $region53: #{tpu_custom_call.1} parent=51 // pred_check
          %p1638 = pneg %p145
        $region54: #{tpu_custom_call.1} parent=51 // pred_check_branch
          %1640 = sbr.rel (%p1638) target = $region56
        $region55: #{tpu_custom_call.1} parent=51 // pred_region
          %s1641 = sand.u32 %s130, 1
          %s1642 = scalar_lea.sflag [#allocation4], %s1641
          %s1643 = sand.u32 %s130, 1
          %s1644 = smul.addr %s1643, 64
          %s1645 = scalar_lea.vmem [#allocation8], %s1644
          %1646 = dma.done %s1642, 1024
        $region56: #{tpu_custom_call.1} parent=51 // pred_fallthru
          _
      $region52: #{tpu_custom_call.1} parent=5 // pred_fallthru
        _
    $region6: #{tpu_custom_call.1} parent=1 // loop_footer
      %s22 = sadd.s32 1, %s18
    $region7: #{tpu_custom_call.1} parent=1 // loop_footer_branch
      %17 = sbr.rel target = $region3
    $region8: #{tpu_custom_call.1} parent=1 // loop_exit
      _
    %1647 = vsyncpa [#allocation3], 1
    %s1648 = scalar_lea.sflag [#allocation3], 1
    %1649 = vsyncpa %s1648, 1
    %1650 = vsyncpa [#allocation6], 1
    %s1651 = scalar_lea.sflag [#allocation6], 1
    %1652 = vsyncpa %s1651, 1
    %1653 = vsyncpa [#allocation4], 1
    %s1654 = scalar_lea.sflag [#allocation4], 1
    %1655 = vsyncpa %s1654, 1

</llo_original>
